<compile_context>
chip_gen: v7x
topology: tpu7x:2x2x1
jax: 0.10.0
libtpu: 0.0.40
codegen_flags: <defaults>
</compile_context>

<pallas_src>
import functools

import jax
import jax.numpy as jnp
from jax import lax
from jax.experimental import pallas as pl
from jax.experimental.pallas import tpu as pltpu

SOFTPLUS_BETA = 7.5
SOFTPLUS_THRESHOLD = 20.0   # PyTorch default: linear region when beta*x > threshold
LN_EPS = 1e-5               # PyTorch nn.LayerNorm default


def _softplus(x):
    bx = SOFTPLUS_BETA * x
    safe = jnp.minimum(bx, SOFTPLUS_THRESHOLD)
    return jnp.where(bx > SOFTPLUS_THRESHOLD, x, jnp.log1p(jnp.exp(safe)) / SOFTPLUS_BETA)


def _layernorm(x, g, b):
    mean = jnp.mean(x, axis=-1, keepdims=True)
    var = jnp.mean((x - mean) ** 2, axis=-1, keepdims=True)
    return (x - mean) * lax.rsqrt(var + LN_EPS) * g + b


# ------------------------- fused EncoderBlock kernel -------------------------

def _encoder_block_kernel(x_ref, wqkv_ref, bqkv_ref, wo_ref, bo_ref,
                          ln1_g_ref, ln1_b_ref, ln2_g_ref, ln2_b_ref,
                          w1_ref, b1_ref, w2_ref, b2_ref,
                          o_ref, ctx_ref, *, num_head, head_dim):
    x = x_ref[0]                              # (N, D) f32
    N, D = x.shape
    hd = head_dim
    mm_dtype = wqkv_ref.dtype                 # bf16 storage for matmul operands

    # --- fused QKV projection: ONE lane-dense (N,D)x(D,3D) MXU matmul, f32 accumulation ---
    qkv = jnp.dot(x.astype(mm_dtype), wqkv_ref[...],
                  preferred_element_type=jnp.float32) + bqkv_ref[...]    # (N, 3D) f32

    # --- per-head attention (static unrolled loop: on TPU a batched dot_general lowers to
    #     per-head MXU calls anyway, and this avoids any in-kernel transpose/reshape).
    #     Softmax normalization is deferred past the PV matmul; the 1/sqrt(hd) scale was
    #     folded into Wq/bq at pack time. ---
    for i in range(num_head):
        q = qkv[:, i * hd:(i + 1) * hd].astype(mm_dtype)                 # (N, hd) bf16
        k = qkv[:, D + i * hd: D + (i + 1) * hd].astype(mm_dtype)
        v = qkv[:, 2 * D + i * hd: 2 * D + (i + 1) * hd].astype(mm_dtype)

        s = lax.dot_general(q, k, (((1,), (1,)), ((), ())),
                            preferred_element_type=jnp.float32)          # (N, N) f32
        s = s - jnp.max(s, axis=-1, keepdims=True)
        p = jnp.exp(s)
        l = jnp.sum(p, axis=-1, keepdims=True)                           # (N, 1)
        ctx = jnp.dot(p.astype(mm_dtype), v,
                      preferred_element_type=jnp.float32)                # (N, hd) f32
        ctx = ctx * pl.reciprocal(l)          # exact reciprocal: rows of softmax sum to 1
        # write this head's slice into the concat-of-heads slab (VMEM scratch, bf16)
        ctx_ref[:, i * hd:(i + 1) * hd] = ctx.astype(ctx_ref.dtype)

    # --- output projection: ONE (N,D)x(D,D) matmul (K = D, accumulation in the MXU) ---
    attn = jnp.dot(ctx_ref[...], wo_ref[...],
                   preferred_element_type=jnp.float32) + bo_ref[...]     # (N, D) f32

    # --- residual + LayerNorm1 (f32) ---
    h1 = _layernorm(x + attn, ln1_g_ref[...], ln1_b_ref[...])

    # --- MLP: Linear -> Softplus(7.5) -> Linear (bf16 matmuls, f32 elementwise) ---
    m = jnp.dot(h1.astype(mm_dtype), w1_ref[...],
                preferred_element_type=jnp.float32) + b1_ref[...]
    m = _softplus(m)
    m = jnp.dot(m.astype(mm_dtype), w2_ref[...],
                preferred_element_type=jnp.float32) + b2_ref[...]

    # --- residual + LayerNorm2 (f32) ---
    o_ref[0] = _layernorm(h1 + m, ln2_g_ref[...], ln2_b_ref[...]).astype(o_ref.dtype)


def _vmem_limit_bytes():
    """Per-generation VMEM budget: ~80% of capacity, capped at 100 MiB (v5e/v6e: 100 MiB,
    v7x: ~51 MiB of its 64 MiB)."""
    try:
        cap = int(pltpu.get_tpu_info().vmem_capacity_bytes)
    except Exception:
        cap = 64 * 1024 * 1024
    return min(int(cap * 4) // 5, 100 * 1024 * 1024)


def encoder_block(x, kp, *, num_head, head_dim):
    """Fused EncoderBlock forward. x: (B, N, D) f32 -> (B, N, D) f32."""
    B, N, D = x.shape
    H = kp["w1"].shape[1]
    assert num_head * head_dim == D, "num_head * head_dim must equal d_model"
    const2 = lambda b: (0, 0)

    flops = 2 * B * (N * D * (3 * D)                       # QKV projection
                     + num_head * (2 * N * N * head_dim)   # QK^T + PV
                     + N * D * D                           # output projection
                     + N * D * H + N * H * D)              # MLP
    transcendentals = B * (num_head * N * N + N * H)       # softmax exp + softplus
    bytes_accessed = 8 * B * N * D + sum(
        int(v.size) * int(v.dtype.itemsize) for v in kp.values())

    return pl.pallas_call(
        functools.partial(_encoder_block_kernel, num_head=num_head, head_dim=head_dim),
        out_shape=jax.ShapeDtypeStruct((B, N, D), jnp.float32),
        grid=(B,),
        in_specs=[
            pl.BlockSpec((1, N, D), lambda b: (b, 0, 0)),   # x (per-batch tile)
            pl.BlockSpec((D, 3 * D), const2),               # Wqkv  (VMEM-resident)
            pl.BlockSpec((1, 3 * D), const2),               # bqkv
            pl.BlockSpec((D, D), const2),                   # Wo
            pl.BlockSpec((1, D), const2),                   # bo
            pl.BlockSpec((1, D), const2),                   # ln1 gamma
            pl.BlockSpec((1, D), const2),                   # ln1 beta
            pl.BlockSpec((1, D), const2),                   # ln2 gamma
            pl.BlockSpec((1, D), const2),                   # ln2 beta
            pl.BlockSpec((D, H), const2),                   # mlp W1
            pl.BlockSpec((1, H), const2),                   # mlp b1
            pl.BlockSpec((H, D), const2),                   # mlp W2
            pl.BlockSpec((1, D), const2),                   # mlp b2
        ],
        out_specs=pl.BlockSpec((1, N, D), lambda b: (b, 0, 0)),
        scratch_shapes=[pltpu.VMEM((N, D), kp["wqkv"].dtype)],   # concat-of-heads ctx slab
        compiler_params=pltpu.CompilerParams(
            dimension_semantics=("parallel",),
            vmem_limit_bytes=_vmem_limit_bytes(),
        ),
        cost_estimate=pl.CostEstimate(flops=flops, transcendentals=transcendentals,
                                      bytes_accessed=bytes_accessed),
    )(x, kp["wqkv"], kp["bqkv"], kp["wo"], kp["bo"],
      kp["ln1_g"], kp["ln1_b"], kp["ln2_g"], kp["ln2_b"],
      kp["w1"], kp["b1"], kp["w2"], kp["b2"])


# ------------------------- parameters (canonical f32) + packing -------------------------

def init_params(key, d_model, num_head, hidden_dim):
    ks = jax.random.split(key, 6)

    def lin(k, din, dout, scale=0.1):
        kw, kb = jax.random.split(k)
        return (jax.random.normal(kw, (din, dout), jnp.float32) * scale,
                jax.random.normal(kb, (dout,), jnp.float32) * scale)

    p = {}
    p["wq"], p["bq"] = lin(ks[0], d_model, d_model)
    p["wk"], p["bk"] = lin(ks[1], d_model, d_model)
    p["wv"], p["bv"] = lin(ks[2], d_model, d_model)
    p["wo"], p["bo"] = lin(ks[3], d_model, d_model)
    p["ln1_g"] = jnp.ones((d_model,), jnp.float32)
    p["ln1_b"] = jnp.zeros((d_model,), jnp.float32)
    p["ln2_g"] = jnp.ones((d_model,), jnp.float32)
    p["ln2_b"] = jnp.zeros((d_model,), jnp.float32)
    p["w1"], p["b1"] = lin(ks[4], d_model, hidden_dim)
    p["w2"], p["b2"] = lin(ks[5], hidden_dim, d_model)
    return p


def pack_kernel_params(p, num_head, mm_dtype=jnp.bfloat16):
    """Host-side, one-time: fold 1/sqrt(hd) into Wq/bq, pack Wq|Wk|Wv column-wise into one
    (D, 3D) matrix, cast matmul weights to bf16 (biases / LN params stay f32)."""
    D = p["wq"].shape[0]
    assert D % num_head == 0
    hd = D // num_head
    scale = 1.0 / (hd ** 0.5)

    wqkv = jnp.concatenate([p["wq"] * scale, p["wk"], p["wv"]], axis=1)   # (D, 3D)
    bqkv = jnp.concatenate([p["bq"] * scale, p["bk"], p["bv"]], axis=0)   # (3D,)

    return {
        "wqkv": wqkv.astype(mm_dtype),
        "bqkv": bqkv.reshape(1, 3 * D).astype(jnp.float32),
        "wo": p["wo"].astype(mm_dtype),                  # rows already in concat-heads order
        "bo": p["bo"].reshape(1, D).astype(jnp.float32),
        "ln1_g": p["ln1_g"].reshape(1, D), "ln1_b": p["ln1_b"].reshape(1, D),
        "ln2_g": p["ln2_g"].reshape(1, D), "ln2_b": p["ln2_b"].reshape(1, D),
        "w1": p["w1"].astype(mm_dtype),
        "b1": p["b1"].reshape(1, -1).astype(jnp.float32),
        "w2": p["w2"].astype(mm_dtype),
        "b2": p["b2"].reshape(1, D).astype(jnp.float32),
    }


# ------------------------- pure-JAX f32 reference (for validation) -------------------------

def reference_forward(x, p, num_head):
    B, N, D = x.shape
    hd = D // num_head

    def heads(t):  # (B, N, D) -> (B, h, N, hd)
        return t.reshape(B, N, num_head, hd).transpose(0, 2, 1, 3)

    q = heads(x @ p["wq"] + p["bq"])
    k = heads(x @ p["wk"] + p["bk"])
    v = heads(x @ p["wv"] + p["bv"])
    s = jnp.einsum("bhnd,bhmd->bhnm", q, k) / (hd ** 0.5)
    a = jax.nn.softmax(s, axis=-1)
    ctx = jnp.einsum("bhnm,bhmd->bhnd", a, v).transpose(0, 2, 1, 3).reshape(B, N, D)
    attn = ctx @ p["wo"] + p["bo"]
    h1 = _layernorm(x + attn, p["ln1_g"], p["ln1_b"])
    m = _softplus(h1 @ p["w1"] + p["b1"])
    m = m @ p["w2"] + p["b2"]
    return _layernorm(h1 + m, p["ln2_g"], p["ln2_b"])


# ------------------------- main -------------------------

if __name__ == "__main__":
    # Lane-dense demo shapes (D, H, head_dim multiples of 128; N multiple of 8/16): every
    # MXU tile and output store is unmasked. Non-multiple shapes still work, just padded.
    d_model, num_head, hidden_dim = 256, 2, 512
    head_dim = d_model // num_head
    B, N = 2, 16

    root = jax.random.PRNGKey(0)
    k_params, k_x = jax.random.split(root)
    params = init_params(k_params, d_model, num_head, hidden_dim)
    x = jax.random.normal(k_x, (B, N, d_model), jnp.float32)

    kparams = pack_kernel_params(params, num_head)
    out = encoder_block(x, kparams, num_head=num_head, head_dim=head_dim)
    out = jax.block_until_ready(out)

    assert out.shape == (B, N, d_model), out.shape
    assert bool(jnp.all(jnp.isfinite(out)))

    # Validate against the f32 reference (bf16 matmul operands => loose-ish tolerance).
    ref = reference_forward(x, params, num_head)
    max_err = float(jnp.max(jnp.abs(out - ref)))
    assert max_err < 1e-1, f"max abs err {max_err}"

    print("KERNEL_OK")
</pallas_src>

<mosaic_0001>
module attributes {stable_mosaic.version = 11 : i64} {
  func.func @_encoder_block_kernel(%arg0: i32, %arg1: memref<1x16x256xf32, #tpu.memory_space<vmem>>, %arg2: memref<256x768xbf16, #tpu.memory_space<vmem>>, %arg3: memref<1x768xf32, #tpu.memory_space<vmem>>, %arg4: memref<256x256xbf16, #tpu.memory_space<vmem>>, %arg5: memref<1x256xf32, #tpu.memory_space<vmem>>, %arg6: memref<1x256xf32, #tpu.memory_space<vmem>>, %arg7: memref<1x256xf32, #tpu.memory_space<vmem>>, %arg8: memref<1x256xf32, #tpu.memory_space<vmem>>, %arg9: memref<1x256xf32, #tpu.memory_space<vmem>>, %arg10: memref<256x512xbf16, #tpu.memory_space<vmem>>, %arg11: memref<1x512xf32, #tpu.memory_space<vmem>>, %arg12: memref<512x256xbf16, #tpu.memory_space<vmem>>, %arg13: memref<1x256xf32, #tpu.memory_space<vmem>>, %arg14: memref<1x16x256xf32, #tpu.memory_space<vmem>>, %arg15: memref<16x256xbf16, #tpu.memory_space<vmem>>) attributes {dimension_semantics = [#tpu.dimension_semantics<parallel>], iteration_bounds = array<i64: 2>, scalar_prefetch = 0 : i64, scratch_operands = 1 : i64, tpu.core_type = #tpu.core_type<tc>, window_params = [{transform_indices = @transform_0, window_bounds = array<i64: 1, 16, 256>}, {pipeline_mode = #tpu.pipeline_mode<synchronous>, transform_indices = @transform_1, window_bounds = array<i64: 256, 768>}, {pipeline_mode = #tpu.pipeline_mode<synchronous>, transform_indices = @transform_2, window_bounds = array<i64: 1, 768>}, {pipeline_mode = #tpu.pipeline_mode<synchronous>, transform_indices = @transform_3, window_bounds = array<i64: 256, 256>}, {pipeline_mode = #tpu.pipeline_mode<synchronous>, transform_indices = @transform_4, window_bounds = array<i64: 1, 256>}, {pipeline_mode = #tpu.pipeline_mode<synchronous>, transform_indices = @transform_5, window_bounds = array<i64: 1, 256>}, {pipeline_mode = #tpu.pipeline_mode<synchronous>, transform_indices = @transform_6, window_bounds = array<i64: 1, 256>}, {pipeline_mode = #tpu.pipeline_mode<synchronous>, transform_indices = @transform_7, window_bounds = array<i64: 1, 256>}, {pipeline_mode = #tpu.pipeline_mode<synchronous>, transform_indices = @transform_8, window_bounds = array<i64: 1, 256>}, {pipeline_mode = #tpu.pipeline_mode<synchronous>, transform_indices = @transform_9, window_bounds = array<i64: 256, 512>}, {pipeline_mode = #tpu.pipeline_mode<synchronous>, transform_indices = @transform_10, window_bounds = array<i64: 1, 512>}, {pipeline_mode = #tpu.pipeline_mode<synchronous>, transform_indices = @transform_11, window_bounds = array<i64: 512, 256>}, {pipeline_mode = #tpu.pipeline_mode<synchronous>, transform_indices = @transform_12, window_bounds = array<i64: 1, 256>}, {transform_indices = @transform_13, window_bounds = array<i64: 1, 16, 256>}]} {
    %c0 = arith.constant 0 : index
    %c0_0 = arith.constant 0 : index
    %c0_1 = arith.constant 0 : index
    %0 = vector.load %arg1[%c0, %c0_0, %c0_1] : memref<1x16x256xf32, #tpu.memory_space<vmem>>, vector<1x16x256xf32>
    %1 = vector.shape_cast %0 : vector<1x16x256xf32> to vector<16x256xf32>
    %2 = arith.truncf %1 : vector<16x256xf32> to vector<16x256xbf16>
    %c0_2 = arith.constant 0 : index
    %c0_3 = arith.constant 0 : index
    %3 = vector.load %arg2[%c0_2, %c0_3] : memref<256x768xbf16, #tpu.memory_space<vmem>>, vector<256x768xbf16>
    %cst = arith.constant dense<0.000000e+00> : vector<16x768xf32>
    %4 = tpu.matmul %2, %3, %cst {dimension_numbers = #tpu.dot_dimension_numbers<[1], [0], [0], [1], [0, 0, 1, 1], [], []>} : vector<16x256xbf16>, vector<256x768xbf16>, vector<16x768xf32> -> vector<16x768xf32>
    %c0_4 = arith.constant 0 : index
    %c0_5 = arith.constant 0 : index
    %5 = vector.load %arg3[%c0_4, %c0_5] : memref<1x768xf32, #tpu.memory_space<vmem>>, vector<1x768xf32>
    %6 = vector.broadcast %5 : vector<1x768xf32> to vector<16x768xf32>
    %7 = arith.addf %4, %6 : vector<16x768xf32>
    %8 = vector.extract_strided_slice %7 {offsets = [0, 0], sizes = [16, 128], strides = [1, 1]} : vector<16x768xf32> to vector<16x128xf32>
    %9 = arith.truncf %8 : vector<16x128xf32> to vector<16x128xbf16>
    %10 = vector.extract_strided_slice %7 {offsets = [0, 256], sizes = [16, 128], strides = [1, 1]} : vector<16x768xf32> to vector<16x128xf32>
    %11 = arith.truncf %10 : vector<16x128xf32> to vector<16x128xbf16>
    %12 = vector.extract_strided_slice %7 {offsets = [0, 512], sizes = [16, 128], strides = [1, 1]} : vector<16x768xf32> to vector<16x128xf32>
    %13 = arith.truncf %12 : vector<16x128xf32> to vector<16x128xbf16>
    %cst_6 = arith.constant dense<0.000000e+00> : vector<16x16xf32>
    %14 = tpu.matmul %9, %11, %cst_6 {dimension_numbers = #tpu.dot_dimension_numbers<[1], [1], [0], [0], [0, 0, 1, 0], [], []>} : vector<16x128xbf16>, vector<16x128xbf16>, vector<16x16xf32> -> vector<16x16xf32>
    %cst_7 = arith.constant dense<0xFF800000> : vector<16xf32>
    %15 = vector.multi_reduction <maximumf>, %14, %cst_7 [1] : vector<16x16xf32> to vector<16xf32>
    %16 = vector.shape_cast %15 : vector<16xf32> to vector<16x1xf32>
    %17 = vector.broadcast %16 : vector<16x1xf32> to vector<16x16xf32>
    %18 = arith.subf %14, %17 : vector<16x16xf32>
    %19 = math.exp %18 : vector<16x16xf32>
    %cst_8 = arith.constant dense<0.000000e+00> : vector<16xf32>
    %20 = vector.multi_reduction <add>, %19, %cst_8 [1] : vector<16x16xf32> to vector<16xf32>
    %21 = vector.shape_cast %20 : vector<16xf32> to vector<16x1xf32>
    %22 = arith.truncf %19 : vector<16x16xf32> to vector<16x16xbf16>
    %cst_9 = arith.constant dense<0.000000e+00> : vector<16x128xf32>
    %23 = tpu.matmul %22, %13, %cst_9 {dimension_numbers = #tpu.dot_dimension_numbers<[1], [0], [0], [1], [0, 0, 1, 1], [], []>} : vector<16x16xbf16>, vector<16x128xbf16>, vector<16x128xf32> -> vector<16x128xf32>
    %24 = tpu.reciprocal %21 : vector<16x1xf32> -> vector<16x1xf32>
    %25 = vector.broadcast %24 : vector<16x1xf32> to vector<16x128xf32>
    %26 = arith.mulf %23, %25 : vector<16x128xf32>
    %27 = arith.truncf %26 : vector<16x128xf32> to vector<16x128xbf16>
    %c0_10 = arith.constant 0 : index
    %c0_11 = arith.constant 0 : index
    %28 = vector.load %arg15[%c0_10, %c0_11] : memref<16x256xbf16, #tpu.memory_space<vmem>>, vector<16x128xbf16>
    tpu.vector_store %arg15[%c0_10, %c0_11], %27 {strides = array<i32>} : memref<16x256xbf16, #tpu.memory_space<vmem>>, vector<16x128xbf16>,
    %29 = vector.extract_strided_slice %7 {offsets = [0, 128], sizes = [16, 128], strides = [1, 1]} : vector<16x768xf32> to vector<16x128xf32>
    %30 = arith.truncf %29 : vector<16x128xf32> to vector<16x128xbf16>
    %31 = vector.extract_strided_slice %7 {offsets = [0, 384], sizes = [16, 128], strides = [1, 1]} : vector<16x768xf32> to vector<16x128xf32>
    %32 = arith.truncf %31 : vector<16x128xf32> to vector<16x128xbf16>
    %33 = vector.extract_strided_slice %7 {offsets = [0, 640], sizes = [16, 128], strides = [1, 1]} : vector<16x768xf32> to vector<16x128xf32>
    %34 = arith.truncf %33 : vector<16x128xf32> to vector<16x128xbf16>
    %cst_12 = arith.constant dense<0.000000e+00> : vector<16x16xf32>
    %35 = tpu.matmul %30, %32, %cst_12 {dimension_numbers = #tpu.dot_dimension_numbers<[1], [1], [0], [0], [0, 0, 1, 0], [], []>} : vector<16x128xbf16>, vector<16x128xbf16>, vector<16x16xf32> -> vector<16x16xf32>
    %cst_13 = arith.constant dense<0xFF800000> : vector<16xf32>
    %36 = vector.multi_reduction <maximumf>, %35, %cst_13 [1] : vector<16x16xf32> to vector<16xf32>
    %37 = vector.shape_cast %36 : vector<16xf32> to vector<16x1xf32>
    %38 = vector.broadcast %37 : vector<16x1xf32> to vector<16x16xf32>
    %39 = arith.subf %35, %38 : vector<16x16xf32>
    %40 = math.exp %39 : vector<16x16xf32>
    %cst_14 = arith.constant dense<0.000000e+00> : vector<16xf32>
    %41 = vector.multi_reduction <add>, %40, %cst_14 [1] : vector<16x16xf32> to vector<16xf32>
    %42 = vector.shape_cast %41 : vector<16xf32> to vector<16x1xf32>
    %43 = arith.truncf %40 : vector<16x16xf32> to vector<16x16xbf16>
    %cst_15 = arith.constant dense<0.000000e+00> : vector<16x128xf32>
    %44 = tpu.matmul %43, %34, %cst_15 {dimension_numbers = #tpu.dot_dimension_numbers<[1], [0], [0], [1], [0, 0, 1, 1], [], []>} : vector<16x16xbf16>, vector<16x128xbf16>, vector<16x128xf32> -> vector<16x128xf32>
    %45 = tpu.reciprocal %42 : vector<16x1xf32> -> vector<16x1xf32>
    %46 = vector.broadcast %45 : vector<16x1xf32> to vector<16x128xf32>
    %47 = arith.mulf %44, %46 : vector<16x128xf32>
    %48 = arith.truncf %47 : vector<16x128xf32> to vector<16x128xbf16>
    %c0_16 = arith.constant 0 : index
    %c128 = arith.constant 128 : index
    %49 = vector.load %arg15[%c0_16, %c128] : memref<16x256xbf16, #tpu.memory_space<vmem>>, vector<16x128xbf16>
    tpu.vector_store %arg15[%c0_16, %c128], %48 {strides = array<i32>} : memref<16x256xbf16, #tpu.memory_space<vmem>>, vector<16x128xbf16>,
    %c0_17 = arith.constant 0 : index
    %c0_18 = arith.constant 0 : index
    %50 = vector.load %arg15[%c0_17, %c0_18] : memref<16x256xbf16, #tpu.memory_space<vmem>>, vector<16x256xbf16>
    %c0_19 = arith.constant 0 : index
    %c0_20 = arith.constant 0 : index
    %51 = vector.load %arg4[%c0_19, %c0_20] : memref<256x256xbf16, #tpu.memory_space<vmem>>, vector<256x256xbf16>
    %cst_21 = arith.constant dense<0.000000e+00> : vector<16x256xf32>
    %52 = tpu.matmul %50, %51, %cst_21 {dimension_numbers = #tpu.dot_dimension_numbers<[1], [0], [0], [1], [0, 0, 1, 1], [], []>} : vector<16x256xbf16>, vector<256x256xbf16>, vector<16x256xf32> -> vector<16x256xf32>
    %c0_22 = arith.constant 0 : index
    %c0_23 = arith.constant 0 : index
    %53 = vector.load %arg5[%c0_22, %c0_23] : memref<1x256xf32, #tpu.memory_space<vmem>>, vector<1x256xf32>
    %54 = vector.broadcast %53 : vector<1x256xf32> to vector<16x256xf32>
    %55 = arith.addf %52, %54 : vector<16x256xf32>
    %56 = arith.addf %1, %55 : vector<16x256xf32>
    %c0_24 = arith.constant 0 : index
    %c0_25 = arith.constant 0 : index
    %57 = vector.load %arg6[%c0_24, %c0_25] : memref<1x256xf32, #tpu.memory_space<vmem>>, vector<1x256xf32>
    %c0_26 = arith.constant 0 : index
    %c0_27 = arith.constant 0 : index
    %58 = vector.load %arg7[%c0_26, %c0_27] : memref<1x256xf32, #tpu.memory_space<vmem>>, vector<1x256xf32>
    %cst_28 = arith.constant dense<0.000000e+00> : vector<16xf32>
    %59 = vector.multi_reduction <add>, %56, %cst_28 [1] : vector<16x256xf32> to vector<16xf32>
    %60 = vector.shape_cast %59 : vector<16xf32> to vector<16x1xf32>
    %cst_29 = arith.constant 2.560000e+02 : f32
    %61 = vector.broadcast %cst_29 : f32 to vector<16x1xf32>
    %62 = arith.divf %60, %61 : vector<16x1xf32>
    %63 = vector.broadcast %62 : vector<16x1xf32> to vector<16x256xf32>
    %64 = arith.subf %56, %63 : vector<16x256xf32>
    %65 = arith.mulf %64, %64 : vector<16x256xf32>
    %cst_30 = arith.constant dense<0.000000e+00> : vector<16xf32>
    %66 = vector.multi_reduction <add>, %65, %cst_30 [1] : vector<16x256xf32> to vector<16xf32>
    %67 = vector.shape_cast %66 : vector<16xf32> to vector<16x1xf32>
    %cst_31 = arith.constant 2.560000e+02 : f32
    %68 = vector.broadcast %cst_31 : f32 to vector<16x1xf32>
    %69 = arith.divf %67, %68 : vector<16x1xf32>
    %70 = vector.broadcast %62 : vector<16x1xf32> to vector<16x256xf32>
    %71 = arith.subf %56, %70 : vector<16x256xf32>
    %cst_32 = arith.constant 9.99999974E-6 : f32
    %72 = vector.broadcast %cst_32 : f32 to vector<16x1xf32>
    %73 = arith.addf %69, %72 : vector<16x1xf32>
    %74 = math.rsqrt %73 : vector<16x1xf32>
    %75 = vector.broadcast %74 : vector<16x1xf32> to vector<16x256xf32>
    %76 = arith.mulf %71, %75 : vector<16x256xf32>
    %77 = vector.broadcast %57 : vector<1x256xf32> to vector<16x256xf32>
    %78 = arith.mulf %76, %77 : vector<16x256xf32>
    %79 = vector.broadcast %58 : vector<1x256xf32> to vector<16x256xf32>
    %80 = arith.addf %78, %79 : vector<16x256xf32>
    %81 = arith.truncf %80 : vector<16x256xf32> to vector<16x256xbf16>
    %c0_33 = arith.constant 0 : index
    %c0_34 = arith.constant 0 : index
    %82 = vector.load %arg10[%c0_33, %c0_34] : memref<256x512xbf16, #tpu.memory_space<vmem>>, vector<256x512xbf16>
    %cst_35 = arith.constant dense<0.000000e+00> : vector<16x512xf32>
    %83 = tpu.matmul %81, %82, %cst_35 {dimension_numbers = #tpu.dot_dimension_numbers<[1], [0], [0], [1], [0, 0, 1, 1], [], []>} : vector<16x256xbf16>, vector<256x512xbf16>, vector<16x512xf32> -> vector<16x512xf32>
    %c0_36 = arith.constant 0 : index
    %c0_37 = arith.constant 0 : index
    %84 = vector.load %arg11[%c0_36, %c0_37] : memref<1x512xf32, #tpu.memory_space<vmem>>, vector<1x512xf32>
    %85 = vector.broadcast %84 : vector<1x512xf32> to vector<16x512xf32>
    %86 = arith.addf %83, %85 : vector<16x512xf32>
    %cst_38 = arith.constant 7.500000e+00 : f32
    %87 = vector.broadcast %cst_38 : f32 to vector<16x512xf32>
    %88 = arith.mulf %87, %86 : vector<16x512xf32>
    %cst_39 = arith.constant 2.000000e+01 : f32
    %89 = vector.broadcast %cst_39 : f32 to vector<16x512xf32>
    %90 = arith.minimumf %88, %89 : vector<16x512xf32>
    %cst_40 = arith.constant 2.000000e+01 : f32
    %91 = vector.broadcast %cst_40 : f32 to vector<16x512xf32>
    %92 = arith.cmpf ogt, %88, %91 : vector<16x512xf32>
    %93 = math.exp %90 : vector<16x512xf32>
    %94 = math.log1p %93 : vector<16x512xf32>
    %cst_41 = arith.constant 7.500000e+00 : f32
    %95 = vector.broadcast %cst_41 : f32 to vector<16x512xf32>
    %96 = arith.divf %94, %95 : vector<16x512xf32>
    %97 = arith.select %92, %86, %96 : vector<16x512xi1>, vector<16x512xf32>
    %98 = arith.truncf %97 : vector<16x512xf32> to vector<16x512xbf16>
    %c0_42 = arith.constant 0 : index
    %c0_43 = arith.constant 0 : index
    %99 = vector.load %arg12[%c0_42, %c0_43] : memref<512x256xbf16, #tpu.memory_space<vmem>>, vector<512x256xbf16>
    %cst_44 = arith.constant dense<0.000000e+00> : vector<16x256xf32>
    %100 = tpu.matmul %98, %99, %cst_44 {dimension_numbers = #tpu.dot_dimension_numbers<[1], [0], [0], [1], [0, 0, 1, 1], [], []>} : vector<16x512xbf16>, vector<512x256xbf16>, vector<16x256xf32> -> vector<16x256xf32>
    %c0_45 = arith.constant 0 : index
    %c0_46 = arith.constant 0 : index
    %101 = vector.load %arg13[%c0_45, %c0_46] : memref<1x256xf32, #tpu.memory_space<vmem>>, vector<1x256xf32>
    %102 = vector.broadcast %101 : vector<1x256xf32> to vector<16x256xf32>
    %103 = arith.addf %100, %102 : vector<16x256xf32>
    %104 = arith.addf %80, %103 : vector<16x256xf32>
    %c0_47 = arith.constant 0 : index
    %c0_48 = arith.constant 0 : index
    %105 = vector.load %arg8[%c0_47, %c0_48] : memref<1x256xf32, #tpu.memory_space<vmem>>, vector<1x256xf32>
    %c0_49 = arith.constant 0 : index
    %c0_50 = arith.constant 0 : index
    %106 = vector.load %arg9[%c0_49, %c0_50] : memref<1x256xf32, #tpu.memory_space<vmem>>, vector<1x256xf32>
    %cst_51 = arith.constant dense<0.000000e+00> : vector<16xf32>
    %107 = vector.multi_reduction <add>, %104, %cst_51 [1] : vector<16x256xf32> to vector<16xf32>
    %108 = vector.shape_cast %107 : vector<16xf32> to vector<16x1xf32>
    %cst_52 = arith.constant 2.560000e+02 : f32
    %109 = vector.broadcast %cst_52 : f32 to vector<16x1xf32>
    %110 = arith.divf %108, %109 : vector<16x1xf32>
    %111 = vector.broadcast %110 : vector<16x1xf32> to vector<16x256xf32>
    %112 = arith.subf %104, %111 : vector<16x256xf32>
    %113 = arith.mulf %112, %112 : vector<16x256xf32>
    %cst_53 = arith.constant dense<0.000000e+00> : vector<16xf32>
    %114 = vector.multi_reduction <add>, %113, %cst_53 [1] : vector<16x256xf32> to vector<16xf32>
    %115 = vector.shape_cast %114 : vector<16xf32> to vector<16x1xf32>
    %cst_54 = arith.constant 2.560000e+02 : f32
    %116 = vector.broadcast %cst_54 : f32 to vector<16x1xf32>
    %117 = arith.divf %115, %116 : vector<16x1xf32>
    %118 = vector.broadcast %110 : vector<16x1xf32> to vector<16x256xf32>
    %119 = arith.subf %104, %118 : vector<16x256xf32>
    %cst_55 = arith.constant 9.99999974E-6 : f32
    %120 = vector.broadcast %cst_55 : f32 to vector<16x1xf32>
    %121 = arith.addf %117, %120 : vector<16x1xf32>
    %122 = math.rsqrt %121 : vector<16x1xf32>
    %123 = vector.broadcast %122 : vector<16x1xf32> to vector<16x256xf32>
    %124 = arith.mulf %119, %123 : vector<16x256xf32>
    %125 = vector.broadcast %105 : vector<1x256xf32> to vector<16x256xf32>
    %126 = arith.mulf %124, %125 : vector<16x256xf32>
    %127 = vector.broadcast %106 : vector<1x256xf32> to vector<16x256xf32>
    %128 = arith.addf %126, %127 : vector<16x256xf32>
    %c0_56 = arith.constant 0 : index
    %c0_57 = arith.constant 0 : index
    %c0_58 = arith.constant 0 : index
    %129 = vector.load %arg14[%c0_56, %c0_57, %c0_58] : memref<1x16x256xf32, #tpu.memory_space<vmem>>, vector<1x16x256xf32>
    %130 = vector.shape_cast %129 : vector<1x16x256xf32> to vector<16x256xf32>
    %131 = vector.shape_cast %128 : vector<16x256xf32> to vector<1x16x256xf32>
    tpu.vector_store %arg14[%c0_56, %c0_57, %c0_58], %131 {strides = array<i32>} : memref<1x16x256xf32, #tpu.memory_space<vmem>>, vector<1x16x256xf32>,
    return
  }
  func.func @transform_0(%arg0: i32) -> (i32, i32, i32) {
    %c0_i32 = arith.constant 0 : i32
    %c0_i32_0 = arith.constant 0 : i32
    %c0_i32_1 = arith.constant 0 : i32
    return %arg0, %c0_i32, %c0_i32_0 : i32, i32, i32
  }
  func.func @transform_1(%arg0: i32) -> (i32, i32) {
    %c0_i32 = arith.constant 0 : i32
    %c0_i32_0 = arith.constant 0 : i32
    %c0_i32_1 = arith.constant 0 : i32
    return %c0_i32, %c0_i32_0 : i32, i32
  }
  func.func @transform_2(%arg0: i32) -> (i32, i32) {
    %c0_i32 = arith.constant 0 : i32
    %c0_i32_0 = arith.constant 0 : i32
    %c0_i32_1 = arith.constant 0 : i32
    return %c0_i32, %c0_i32_0 : i32, i32
  }
  func.func @transform_3(%arg0: i32) -> (i32, i32) {
    %c0_i32 = arith.constant 0 : i32
    %c0_i32_0 = arith.constant 0 : i32
    %c0_i32_1 = arith.constant 0 : i32
    return %c0_i32, %c0_i32_0 : i32, i32
  }
  func.func @transform_4(%arg0: i32) -> (i32, i32) {
    %c0_i32 = arith.constant 0 : i32
    %c0_i32_0 = arith.constant 0 : i32
    %c0_i32_1 = arith.constant 0 : i32
    return %c0_i32, %c0_i32_0 : i32, i32
  }
  func.func @transform_5(%arg0: i32) -> (i32, i32) {
    %c0_i32 = arith.constant 0 : i32
    %c0_i32_0 = arith.constant 0 : i32
    %c0_i32_1 = arith.constant 0 : i32
    return %c0_i32, %c0_i32_0 : i32, i32
  }
  func.func @transform_6(%arg0: i32) -> (i32, i32) {
    %c0_i32 = arith.constant 0 : i32
    %c0_i32_0 = arith.constant 0 : i32
    %c0_i32_1 = arith.constant 0 : i32
    return %c0_i32, %c0_i32_0 : i32, i32
  }
  func.func @transform_7(%arg0: i32) -> (i32, i32) {
    %c0_i32 = arith.constant 0 : i32
    %c0_i32_0 = arith.constant 0 : i32
    %c0_i32_1 = arith.constant 0 : i32
    return %c0_i32, %c0_i32_0 : i32, i32
  }
  func.func @transform_8(%arg0: i32) -> (i32, i32) {
    %c0_i32 = arith.constant 0 : i32
    %c0_i32_0 = arith.constant 0 : i32
    %c0_i32_1 = arith.constant 0 : i32
    return %c0_i32, %c0_i32_0 : i32, i32
  }
  func.func @transform_9(%arg0: i32) -> (i32, i32) {
    %c0_i32 = arith.constant 0 : i32
    %c0_i32_0 = arith.constant 0 : i32
    %c0_i32_1 = arith.constant 0 : i32
    return %c0_i32, %c0_i32_0 : i32, i32
  }
  func.func @transform_10(%arg0: i32) -> (i32, i32) {
    %c0_i32 = arith.constant 0 : i32
    %c0_i32_0 = arith.constant 0 : i32
    %c0_i32_1 = arith.constant 0 : i32
    return %c0_i32, %c0_i32_0 : i32, i32
  }
  func.func @transform_11(%arg0: i32) -> (i32, i32) {
    %c0_i32 = arith.constant 0 : i32
    %c0_i32_0 = arith.constant 0 : i32
    %c0_i32_1 = arith.constant 0 : i32
    return %c0_i32, %c0_i32_0 : i32, i32
  }
  func.func @transform_12(%arg0: i32) -> (i32, i32) {
    %c0_i32 = arith.constant 0 : i32
    %c0_i32_0 = arith.constant 0 : i32
    %c0_i32_1 = arith.constant 0 : i32
    return %c0_i32, %c0_i32_0 : i32, i32
  }
  func.func @transform_13(%arg0: i32) -> (i32, i32, i32) {
    %c0_i32 = arith.constant 0 : i32
    %c0_i32_0 = arith.constant 0 : i32
    %c0_i32_1 = arith.constant 0 : i32
    return %arg0, %c0_i32, %c0_i32_0 : i32, i32, i32
  }
}

</mosaic_0001>

<llo_original>
// kernel: tpu_custom_call.1
$region0: #{tpu_custom_call.1}
  #allocation0 [shape = 'u32[]', space=smem, size = 0x4, offset = 0x4, fixed_abs, tag = 'smem constant byte address 0x4 - core index']
  #allocation1 [shape = 'u32[144,128]{1,0:T(1,128)}', space=vmem, size = 0x12000, scoped, tag = 'internal scratch']
  #allocation2 [shape = 'bf16[16,256]{1,0:T(16,128)(2,1)}', space=vmem, size = 0x2000, scoped, tag = 'scratch operand']
  %s0 = inlined_call_operand.hbm [shape: f32[2,16,256], index: 0, kind: input, shape index: {}]
  %s1 = inlined_call_operand.hbm [shape: bf16[256,768], index: 1, kind: input, shape index: {}]
  %s2 = inlined_call_operand.vmem [shape: f32[1,768], index: 2, kind: input, shape index: {}]
  %s3 = inlined_call_operand.hbm [shape: bf16[256,256], index: 3, kind: input, shape index: {}]
  %s4 = inlined_call_operand.vmem [shape: f32[1,256], index: 4, kind: input, shape index: {}]
  %s5 = inlined_call_operand.vmem [shape: f32[1,256], index: 5, kind: input, shape index: {}]
  %s6 = inlined_call_operand.vmem [shape: f32[1,256], index: 6, kind: input, shape index: {}]
  %s7 = inlined_call_operand.vmem [shape: f32[1,256], index: 7, kind: input, shape index: {}]
  %s8 = inlined_call_operand.vmem [shape: f32[1,256], index: 8, kind: input, shape index: {}]
  %s9 = inlined_call_operand.hbm [shape: bf16[256,512], index: 9, kind: input, shape index: {}]
  %s10 = inlined_call_operand.vmem [shape: f32[1,512], index: 10, kind: input, shape index: {}]
  %s11 = inlined_call_operand.hbm [shape: bf16[512,256], index: 11, kind: input, shape index: {}]
  %s12 = inlined_call_operand.vmem [shape: f32[1,256], index: 12, kind: input, shape index: {}]
  %s13 = inlined_call_operand.hbm [shape: f32[2,16,256], index: 13, kind: output, shape index: {}]
  %s14 = sld [smem:[#allocation0]]
  $region105: #{tpu_custom_call.1} parent=0
    _
  %s16 = ssub.s32 1, %s14
  %s17 = scalar_select 0, %s16, %s14
  $region1: #{tpu_custom_call.1} parent=0
    #allocation3 [shape = 'u8[32768]{0}', space=vmem, size = 0x8000, scoped, tag = 'input window, operand 0']
    #allocation4 [shape = 's32[2]{0}', space=sflag, size = 0x8, scoped, tag = 'scoped memory for tpu_custom_call.1']
    #allocation5 [shape = 's32[2]{0}', space=sflag, size = 0x8, scoped, tag = 'scoped memory for tpu_custom_call.1']
    #allocation6 [shape = 'u8[393216]{0}', space=vmem, size = 0x60000, scoped, tag = 'input window, operand 1, single buffered']
    #allocation7 [shape = 's32[1]{0}', space=sflag, size = 0x4, scoped, tag = 'scoped memory for tpu_custom_call.1']
    #allocation8 [shape = 'u8[131072]{0}', space=vmem, size = 0x20000, scoped, tag = 'input window, operand 3, single buffered']
    #allocation9 [shape = 'u8[262144]{0}', space=vmem, size = 0x40000, scoped, tag = 'input window, operand 9, single buffered']
    #allocation10 [shape = 's32[1]{0}', space=sflag, size = 0x4, scoped, tag = 'scoped memory for tpu_custom_call.1']
    #allocation11 [shape = 'u8[262144]{0}', space=vmem, size = 0x40000, scoped, tag = 'input window, operand 11, single buffered']
    #allocation12 [shape = 'u8[32768]{0}', space=vmem, size = 0x8000, scoped, tag = 'output window, operand 0']
    %18 = vsyncpa [#allocation4], 0
    %s19 = scalar_lea.sflag [#allocation4], 1
    %20 = vsyncpa %s19, 0
    %21 = vsyncpa [#allocation7], 0
    %22 = vsyncpa [#allocation10], 0
    %23 = vsyncpa [#allocation5], 0
    %s24 = scalar_lea.sflag [#allocation5], 1
    %25 = vsyncpa %s24, 0
    loop: start=0, step=1, limit=4
    $region2: #{tpu_custom_call.1} parent=1 // loop_pre_header
      _
    $region3: #{tpu_custom_call.1} parent=1 // loop_header
      %s27 = sphi 0, %s31
      %p28 = scmp.ge.s32.totalorder %s27, 4
      %s37 = sphi 0, %s39
      %s40 = sphi 0, %s37
      %s41 = sphi 0, %s40
      %s57 = sphi 0, %s41
      %s61 = sphi 0, %s61
      %s63 = sphi 0, %s61
      %s64 = sphi 0, %s63
      %s78 = sphi 0, %s64
      %s82 = sphi 0, %s82
      %s84 = sphi 0, %s82
      %s85 = sphi 0, %s84
      %s99 = sphi 0, %s85
      %s103 = sphi 0, %s103
      %s105 = sphi 0, %s103
      %s106 = sphi 0, %s105
      %s120 = sphi 0, %s106
      %s124 = sphi 0, %s124
      %s126 = sphi 0, %s124
      %s127 = sphi 0, %s126
      %s141 = sphi 0, %s127
      %s145 = sphi 0, %s145
      %s147 = sphi 0, %s145
      %s148 = sphi 0, %s147
      %s162 = sphi 0, %s148
      %s166 = sphi 0, %s166
      %s168 = sphi 0, %s166
      %s169 = sphi 0, %s168
      %s183 = sphi 0, %s169
      %s187 = sphi 0, %s187
      %s189 = sphi 0, %s187
      %s190 = sphi 0, %s189
      %s204 = sphi 0, %s190
      %s208 = sphi 0, %s208
      %s210 = sphi 0, %s208
      %s211 = sphi 0, %s210
      %s225 = sphi 0, %s211
      %s229 = sphi 0, %s229
      %s231 = sphi 0, %s229
      %s232 = sphi 0, %s231
      %s246 = sphi 0, %s232
      %s250 = sphi 0, %s250
      %s252 = sphi 0, %s250
      %s253 = sphi 0, %s252
      %s267 = sphi 0, %s253
      %s271 = sphi 0, %s271
      %s273 = sphi 0, %s271
      %s274 = sphi 0, %s273
      %s288 = sphi 0, %s274
      %s292 = sphi 0, %s292
      %s294 = sphi 0, %s292
      %s295 = sphi 0, %s294
      %s309 = sphi 0, %s295
      %s315 = sphi 0, %s317
      %s318 = sphi 0, %s315
      %s319 = sphi 0, %s318
      %s335 = sphi 0, %s319
    $region4: #{tpu_custom_call.1} parent=1 // loop_header_branch
      %30 = sbr.rel (%p28) target = $region8
    $region5: #{tpu_custom_call.1} parent=1 // loop_body
      %s32 = ssub.s32 %s27, 1
      %s33 = ssub.s32 %s27, 2
      %s34 = sadd.s32 %s27, 1
      %s35 = ssub.s32 %s27, %s34
      %p36 = scmp.eq.s32.totalorder %s35, 0
      %s38 = sadd.s32 %s37, 1
      %s39 = scalar_select %p36, %s37, %s38
      %p42 = pneg %p36
      %p43 = scmp.eq.s32.totalorder %s27, 1
      %p44 = por %p42, %p43
      %p45 = scmp.ne.s32.totalorder %s37, %s40
      %p46 = scmp.eq.s32.totalorder %s27, 0
      %p47 = por %p45, %p46
      %p48 = scmp.ne.s32.totalorder %s37, %s40
      %p49 = scmp.eq.s32.totalorder %s32, 1
      %p50 = por %p48, %p49
      %p51 = scmp.ne.s32.totalorder %s40, %s41
      %p52 = scmp.eq.s32.totalorder %s32, 0
      %p53 = por %p51, %p52
      %p54 = scmp.ne.s32.totalorder %s40, %s41
      %p55 = scmp.eq.s32.totalorder %s33, 1
      %p56 = por %p54, %p55
      %p58 = scmp.ne.s32.totalorder %s41, %s57
      %p59 = scmp.eq.s32.totalorder %s33, 0
      %p60 = por %p58, %p59
      %s62 = sadd.s32 %s61, 1
      %p65 = scmp.eq.s32.totalorder %s27, 1
      %p66 = scmp.ne.s32.totalorder %s61, %s63
      %p67 = scmp.eq.s32.totalorder %s27, 0
      %p68 = por %p66, %p67
      %p69 = scmp.ne.s32.totalorder %s61, %s63
      %p70 = scmp.eq.s32.totalorder %s32, 1
      %p71 = por %p69, %p70
      %p72 = scmp.ne.s32.totalorder %s63, %s64
      %p73 = scmp.eq.s32.totalorder %s32, 0
      %p74 = por %p72, %p73
      %p75 = scmp.ne.s32.totalorder %s63, %s64
      %p76 = scmp.eq.s32.totalorder %s33, 1
      %p77 = por %p75, %p76
      %p79 = scmp.ne.s32.totalorder %s64, %s78
      %p80 = scmp.eq.s32.totalorder %s33, 0
      %p81 = por %p79, %p80
      %s83 = sadd.s32 %s82, 1
      %p86 = scmp.eq.s32.totalorder %s27, 1
      %p87 = scmp.ne.s32.totalorder %s82, %s84
      %p88 = scmp.eq.s32.totalorder %s27, 0
      %p89 = por %p87, %p88
      %p90 = scmp.ne.s32.totalorder %s82, %s84
      %p91 = scmp.eq.s32.totalorder %s32, 1
      %p92 = por %p90, %p91
      %p93 = scmp.ne.s32.totalorder %s84, %s85
      %p94 = scmp.eq.s32.totalorder %s32, 0
      %p95 = por %p93, %p94
      %p96 = scmp.ne.s32.totalorder %s84, %s85
      %p97 = scmp.eq.s32.totalorder %s33, 1
      %p98 = por %p96, %p97
      %p100 = scmp.ne.s32.totalorder %s85, %s99
      %p101 = scmp.eq.s32.totalorder %s33, 0
      %p102 = por %p100, %p101
      %s104 = sadd.s32 %s103, 1
      %p107 = scmp.eq.s32.totalorder %s27, 1
      %p108 = scmp.ne.s32.totalorder %s103, %s105
      %p109 = scmp.eq.s32.totalorder %s27, 0
      %p110 = por %p108, %p109
      %p111 = scmp.ne.s32.totalorder %s103, %s105
      %p112 = scmp.eq.s32.totalorder %s32, 1
      %p113 = por %p111, %p112
      %p114 = scmp.ne.s32.totalorder %s105, %s106
      %p115 = scmp.eq.s32.totalorder %s32, 0
      %p116 = por %p114, %p115
      %p117 = scmp.ne.s32.totalorder %s105, %s106
      %p118 = scmp.eq.s32.totalorder %s33, 1
      %p119 = por %p117, %p118
      %p121 = scmp.ne.s32.totalorder %s106, %s120
      %p122 = scmp.eq.s32.totalorder %s33, 0
      %p123 = por %p121, %p122
      %s125 = sadd.s32 %s124, 1
      %p128 = scmp.eq.s32.totalorder %s27, 1
      %p129 = scmp.ne.s32.totalorder %s124, %s126
      %p130 = scmp.eq.s32.totalorder %s27, 0
      %p131 = por %p129, %p130
      %p132 = scmp.ne.s32.totalorder %s124, %s126
      %p133 = scmp.eq.s32.totalorder %s32, 1
      %p134 = por %p132, %p133
      %p135 = scmp.ne.s32.totalorder %s126, %s127
      %p136 = scmp.eq.s32.totalorder %s32, 0
      %p137 = por %p135, %p136
      %p138 = scmp.ne.s32.totalorder %s126, %s127
      %p139 = scmp.eq.s32.totalorder %s33, 1
      %p140 = por %p138, %p139
      %p142 = scmp.ne.s32.totalorder %s127, %s141
      %p143 = scmp.eq.s32.totalorder %s33, 0
      %p144 = por %p142, %p143
      %s146 = sadd.s32 %s145, 1
      %p149 = scmp.eq.s32.totalorder %s27, 1
      %p150 = scmp.ne.s32.totalorder %s145, %s147
      %p151 = scmp.eq.s32.totalorder %s27, 0
      %p152 = por %p150, %p151
      %p153 = scmp.ne.s32.totalorder %s145, %s147
      %p154 = scmp.eq.s32.totalorder %s32, 1
      %p155 = por %p153, %p154
      %p156 = scmp.ne.s32.totalorder %s147, %s148
      %p157 = scmp.eq.s32.totalorder %s32, 0
      %p158 = por %p156, %p157
      %p159 = scmp.ne.s32.totalorder %s147, %s148
      %p160 = scmp.eq.s32.totalorder %s33, 1
      %p161 = por %p159, %p160
      %p163 = scmp.ne.s32.totalorder %s148, %s162
      %p164 = scmp.eq.s32.totalorder %s33, 0
      %p165 = por %p163, %p164
      %s167 = sadd.s32 %s166, 1
      %p170 = scmp.eq.s32.totalorder %s27, 1
      %p171 = scmp.ne.s32.totalorder %s166, %s168
      %p172 = scmp.eq.s32.totalorder %s27, 0
      %p173 = por %p171, %p172
      %p174 = scmp.ne.s32.totalorder %s166, %s168
      %p175 = scmp.eq.s32.totalorder %s32, 1
      %p176 = por %p174, %p175
      %p177 = scmp.ne.s32.totalorder %s168, %s169
      %p178 = scmp.eq.s32.totalorder %s32, 0
      %p179 = por %p177, %p178
      %p180 = scmp.ne.s32.totalorder %s168, %s169
      %p181 = scmp.eq.s32.totalorder %s33, 1
      %p182 = por %p180, %p181
      %p184 = scmp.ne.s32.totalorder %s169, %s183
      %p185 = scmp.eq.s32.totalorder %s33, 0
      %p186 = por %p184, %p185
      %s188 = sadd.s32 %s187, 1
      %p191 = scmp.eq.s32.totalorder %s27, 1
      %p192 = scmp.ne.s32.totalorder %s187, %s189
      %p193 = scmp.eq.s32.totalorder %s27, 0
      %p194 = por %p192, %p193
      %p195 = scmp.ne.s32.totalorder %s187, %s189
      %p196 = scmp.eq.s32.totalorder %s32, 1
      %p197 = por %p195, %p196
      %p198 = scmp.ne.s32.totalorder %s189, %s190
      %p199 = scmp.eq.s32.totalorder %s32, 0
      %p200 = por %p198, %p199
      %p201 = scmp.ne.s32.totalorder %s189, %s190
      %p202 = scmp.eq.s32.totalorder %s33, 1
      %p203 = por %p201, %p202
      %p205 = scmp.ne.s32.totalorder %s190, %s204
      %p206 = scmp.eq.s32.totalorder %s33, 0
      %p207 = por %p205, %p206
      %s209 = sadd.s32 %s208, 1
      %p212 = scmp.eq.s32.totalorder %s27, 1
      %p213 = scmp.ne.s32.totalorder %s208, %s210
      %p214 = scmp.eq.s32.totalorder %s27, 0
      %p215 = por %p213, %p214
      %p216 = scmp.ne.s32.totalorder %s208, %s210
      %p217 = scmp.eq.s32.totalorder %s32, 1
      %p218 = por %p216, %p217
      %p219 = scmp.ne.s32.totalorder %s210, %s211
      %p220 = scmp.eq.s32.totalorder %s32, 0
      %p221 = por %p219, %p220
      %p222 = scmp.ne.s32.totalorder %s210, %s211
      %p223 = scmp.eq.s32.totalorder %s33, 1
      %p224 = por %p222, %p223
      %p226 = scmp.ne.s32.totalorder %s211, %s225
      %p227 = scmp.eq.s32.totalorder %s33, 0
      %p228 = por %p226, %p227
      %s230 = sadd.s32 %s229, 1
      %p233 = scmp.eq.s32.totalorder %s27, 1
      %p234 = scmp.ne.s32.totalorder %s229, %s231
      %p235 = scmp.eq.s32.totalorder %s27, 0
      %p236 = por %p234, %p235
      %p237 = scmp.ne.s32.totalorder %s229, %s231
      %p238 = scmp.eq.s32.totalorder %s32, 1
      %p239 = por %p237, %p238
      %p240 = scmp.ne.s32.totalorder %s231, %s232
      %p241 = scmp.eq.s32.totalorder %s32, 0
      %p242 = por %p240, %p241
      %p243 = scmp.ne.s32.totalorder %s231, %s232
      %p244 = scmp.eq.s32.totalorder %s33, 1
      %p245 = por %p243, %p244
      %p247 = scmp.ne.s32.totalorder %s232, %s246
      %p248 = scmp.eq.s32.totalorder %s33, 0
      %p249 = por %p247, %p248
      %s251 = sadd.s32 %s250, 1
      %p254 = scmp.eq.s32.totalorder %s27, 1
      %p255 = scmp.ne.s32.totalorder %s250, %s252
      %p256 = scmp.eq.s32.totalorder %s27, 0
      %p257 = por %p255, %p256
      %p258 = scmp.ne.s32.totalorder %s250, %s252
      %p259 = scmp.eq.s32.totalorder %s32, 1
      %p260 = por %p258, %p259
      %p261 = scmp.ne.s32.totalorder %s252, %s253
      %p262 = scmp.eq.s32.totalorder %s32, 0
      %p263 = por %p261, %p262
      %p264 = scmp.ne.s32.totalorder %s252, %s253
      %p265 = scmp.eq.s32.totalorder %s33, 1
      %p266 = por %p264, %p265
      %p268 = scmp.ne.s32.totalorder %s253, %s267
      %p269 = scmp.eq.s32.totalorder %s33, 0
      %p270 = por %p268, %p269
      %s272 = sadd.s32 %s271, 1
      %p275 = scmp.eq.s32.totalorder %s27, 1
      %p276 = scmp.ne.s32.totalorder %s271, %s273
      %p277 = scmp.eq.s32.totalorder %s27, 0
      %p278 = por %p276, %p277
      %p279 = scmp.ne.s32.totalorder %s271, %s273
      %p280 = scmp.eq.s32.totalorder %s32, 1
      %p281 = por %p279, %p280
      %p282 = scmp.ne.s32.totalorder %s273, %s274
      %p283 = scmp.eq.s32.totalorder %s32, 0
      %p284 = por %p282, %p283
      %p285 = scmp.ne.s32.totalorder %s273, %s274
      %p286 = scmp.eq.s32.totalorder %s33, 1
      %p287 = por %p285, %p286
      %p289 = scmp.ne.s32.totalorder %s274, %s288
      %p290 = scmp.eq.s32.totalorder %s33, 0
      %p291 = por %p289, %p290
      %s293 = sadd.s32 %s292, 1
      %p296 = scmp.eq.s32.totalorder %s27, 1
      %p297 = scmp.ne.s32.totalorder %s292, %s294
      %p298 = scmp.eq.s32.totalorder %s27, 0
      %p299 = por %p297, %p298
      %p300 = scmp.ne.s32.totalorder %s292, %s294
      %p301 = scmp.eq.s32.totalorder %s32, 1
      %p302 = por %p300, %p301
      %p303 = scmp.ne.s32.totalorder %s294, %s295
      %p304 = scmp.eq.s32.totalorder %s32, 0
      %p305 = por %p303, %p304
      %p306 = scmp.ne.s32.totalorder %s294, %s295
      %p307 = scmp.eq.s32.totalorder %s33, 1
      %p308 = por %p306, %p307
      %p310 = scmp.ne.s32.totalorder %s295, %s309
      %p311 = scmp.eq.s32.totalorder %s33, 0
      %p312 = por %p310, %p311
      %s313 = ssub.s32 %s27, %s34
      %p314 = scmp.eq.s32.totalorder %s313, 0
      %s316 = sadd.s32 %s315, 1
      %s317 = scalar_select %p314, %s315, %s316
      %p320 = pneg %p314
      %p321 = scmp.eq.s32.totalorder %s27, 1
      %p322 = por %p320, %p321
      %p323 = scmp.ne.s32.totalorder %s315, %s318
      %p324 = scmp.eq.s32.totalorder %s27, 0
      %p325 = por %p323, %p324
      %p326 = scmp.ne.s32.totalorder %s315, %s318
      %p327 = scmp.eq.s32.totalorder %s32, 1
      %p328 = por %p326, %p327
      %p329 = scmp.ne.s32.totalorder %s318, %s319
      %p330 = scmp.eq.s32.totalorder %s32, 0
      %p331 = por %p329, %p330
      %p332 = scmp.ne.s32.totalorder %s318, %s319
      %p333 = scmp.eq.s32.totalorder %s33, 1
      %p334 = por %p332, %p333
      %p336 = scmp.ne.s32.totalorder %s319, %s335
      %p337 = scmp.eq.s32.totalorder %s33, 0
      %p338 = por %p336, %p337
      %p339 = scmp.le.s32.totalorder 1, %s27
      %p340 = scmp.lt.s32.totalorder %s27, 3
      %p341 = pnand %p339, %p340
      %p342 = pneg %p341
      // Predicated region
      $region9: #{tpu_custom_call.1} parent=5 // pred_check
        _
      $region10: #{tpu_custom_call.1} parent=5 // pred_check_branch
        %344 = sbr.rel (%p341) target = $region12
      $region11: #{tpu_custom_call.1} parent=5 // pred_region
        %s345 = ssub.s32 %s27, 1
        // Predicated region
        $region13: #{tpu_custom_call.1} parent=11 // pred_check
          %p346 = pneg %p74
        $region14: #{tpu_custom_call.1} parent=11 // pred_check_branch
          %348 = sbr.rel (%p346) target = $region16
        $region15: #{tpu_custom_call.1} parent=11 // pred_region
          %s350 = ssub.s32 12288, 12288
          %351 = vsyncadd [#allocation7], %s350
          %s352 = sshll.u32 [#allocation6], 4
          %s353 = int_to_ptr.vmem [resolvable:$true] %s352
          %358 = dma.hbm_to_vmem [thread:$0]  %s1, 12288, %s353, [#allocation7], 384, 384, 24
        $region16: #{tpu_custom_call.1} parent=11 // pred_fallthru
          _
        // Predicated region
        $region17: #{tpu_custom_call.1} parent=11 // pred_check
          %p359 = pneg %p95
        $region18: #{tpu_custom_call.1} parent=11 // pred_check_branch
          %361 = sbr.rel (%p359) target = $region20
        $region19: #{tpu_custom_call.1} parent=11 // pred_region
          _
        $region20: #{tpu_custom_call.1} parent=11 // pred_fallthru
          _
        // Predicated region
        $region21: #{tpu_custom_call.1} parent=11 // pred_check
          %p362 = pneg %p116
        $region22: #{tpu_custom_call.1} parent=11 // pred_check_branch
          %364 = sbr.rel (%p362) target = $region24
        $region23: #{tpu_custom_call.1} parent=11 // pred_region
          %s366 = ssub.s32 4096, 4096
          %367 = vsyncadd [#allocation7], %s366
          %s368 = sshll.u32 [#allocation8], 4
          %s369 = int_to_ptr.vmem [resolvable:$true] %s368
          %374 = dma.hbm_to_vmem [thread:$0]  %s3, 4096, %s369, [#allocation7], 128, 128, 8
        $region24: #{tpu_custom_call.1} parent=11 // pred_fallthru
          _
        // Predicated region
        $region25: #{tpu_custom_call.1} parent=11 // pred_check
          %p375 = pneg %p137
        $region26: #{tpu_custom_call.1} parent=11 // pred_check_branch
          %377 = sbr.rel (%p375) target = $region28
        $region27: #{tpu_custom_call.1} parent=11 // pred_region
          _
        $region28: #{tpu_custom_call.1} parent=11 // pred_fallthru
          _
        // Predicated region
        $region29: #{tpu_custom_call.1} parent=11 // pred_check
          %p378 = pneg %p158
        $region30: #{tpu_custom_call.1} parent=11 // pred_check_branch
          %380 = sbr.rel (%p378) target = $region32
        $region31: #{tpu_custom_call.1} parent=11 // pred_region
          _
        $region32: #{tpu_custom_call.1} parent=11 // pred_fallthru
          _
        // Predicated region
        $region33: #{tpu_custom_call.1} parent=11 // pred_check
          %p381 = pneg %p179
        $region34: #{tpu_custom_call.1} parent=11 // pred_check_branch
          %383 = sbr.rel (%p381) target = $region36
        $region35: #{tpu_custom_call.1} parent=11 // pred_region
          _
        $region36: #{tpu_custom_call.1} parent=11 // pred_fallthru
          _
        // Predicated region
        $region37: #{tpu_custom_call.1} parent=11 // pred_check
          %p384 = pneg %p200
        $region38: #{tpu_custom_call.1} parent=11 // pred_check_branch
          %386 = sbr.rel (%p384) target = $region40
        $region39: #{tpu_custom_call.1} parent=11 // pred_region
          _
        $region40: #{tpu_custom_call.1} parent=11 // pred_fallthru
          _
        // Predicated region
        $region41: #{tpu_custom_call.1} parent=11 // pred_check
          %p387 = pneg %p221
        $region42: #{tpu_custom_call.1} parent=11 // pred_check_branch
          %389 = sbr.rel (%p387) target = $region44
        $region43: #{tpu_custom_call.1} parent=11 // pred_region
          _
        $region44: #{tpu_custom_call.1} parent=11 // pred_fallthru
          _
        // Predicated region
        $region45: #{tpu_custom_call.1} parent=11 // pred_check
          %p390 = pneg %p242
        $region46: #{tpu_custom_call.1} parent=11 // pred_check_branch
          %392 = sbr.rel (%p390) target = $region48
        $region47: #{tpu_custom_call.1} parent=11 // pred_region
          %s394 = ssub.s32 8192, 8192
          %395 = vsyncadd [#allocation10], %s394
          %s396 = sshll.u32 [#allocation9], 4
          %s397 = int_to_ptr.vmem [resolvable:$true] %s396
          %402 = dma.hbm_to_vmem [thread:$0]  %s9, 8192, %s397, [#allocation10], 256, 256, 16
        $region48: #{tpu_custom_call.1} parent=11 // pred_fallthru
          _
        // Predicated region
        $region49: #{tpu_custom_call.1} parent=11 // pred_check
          %p403 = pneg %p263
        $region50: #{tpu_custom_call.1} parent=11 // pred_check_branch
          %405 = sbr.rel (%p403) target = $region52
        $region51: #{tpu_custom_call.1} parent=11 // pred_region
          _
        $region52: #{tpu_custom_call.1} parent=11 // pred_fallthru
          _
        // Predicated region
        $region53: #{tpu_custom_call.1} parent=11 // pred_check
          %p406 = pneg %p284
        $region54: #{tpu_custom_call.1} parent=11 // pred_check_branch
          %408 = sbr.rel (%p406) target = $region56
        $region55: #{tpu_custom_call.1} parent=11 // pred_region
          %s410 = ssub.s32 8192, 8192
          %411 = vsyncadd [#allocation10], %s410
          %s412 = sshll.u32 [#allocation11], 4
          %s413 = int_to_ptr.vmem [resolvable:$true] %s412
          %418 = dma.hbm_to_vmem [thread:$0]  %s11, 8192, %s413, [#allocation10], 128, 128, 8
        $region56: #{tpu_custom_call.1} parent=11 // pred_fallthru
          _
        // Predicated region
        $region57: #{tpu_custom_call.1} parent=11 // pred_check
          %p419 = pneg %p305
        $region58: #{tpu_custom_call.1} parent=11 // pred_check_branch
          %421 = sbr.rel (%p419) target = $region60
        $region59: #{tpu_custom_call.1} parent=11 // pred_region
          _
        $region60: #{tpu_custom_call.1} parent=11 // pred_fallthru
          _
      $region12: #{tpu_custom_call.1} parent=5 // pred_fallthru
        _
      %p422 = scmp.lt.s32.totalorder %s27, 2
      // Predicated region
      $region61: #{tpu_custom_call.1} parent=5 // pred_check
        %p423 = pneg %p422
      $region62: #{tpu_custom_call.1} parent=5 // pred_check_branch
        %425 = sbr.rel (%p423) target = $region64
      $region63: #{tpu_custom_call.1} parent=5 // pred_region
        // Predicated region
        $region65: #{tpu_custom_call.1} parent=63 // pred_check
          %p426 = pneg %p47
        $region66: #{tpu_custom_call.1} parent=63 // pred_check_branch
          %428 = sbr.rel (%p426) target = $region68
        $region67: #{tpu_custom_call.1} parent=63 // pred_region
          %s429 = sand.u32 %s37, 1
          %s430 = scalar_lea.sflag [#allocation4], %s429
          %s431 = sand.u32 %s37, 1
          %s432 = smul.addr %s431, 32
          %s433 = scalar_lea.vmem [#allocation3], %s432
          %s435 = ssub.s32 512, 512
          %436 = vsyncadd %s430, %s435
          %s437 = smul.addr %s27, 4
          %s438 = smul.addr %s437, 128
          %s439 = scalar_lea.hbm %s0, %s438
          %s440 = sshll.u32 %s433, 4
          %s441 = int_to_ptr.vmem [resolvable:$true] %s440
          %446 = dma.hbm_to_vmem [thread:$0]  %s439, 512, %s441, %s430, 256, 256, 16
        $region68: #{tpu_custom_call.1} parent=63 // pred_fallthru
          _
      $region64: #{tpu_custom_call.1} parent=5 // pred_fallthru
        _
      %p447 = scmp.le.s32.totalorder 1, %s27
      %p448 = scmp.lt.s32.totalorder %s27, 3
      %p449 = pnand %p447, %p448
      %p450 = pneg %p449
      // Predicated region
      $region69: #{tpu_custom_call.1} parent=5 // pred_check
        _
      $region70: #{tpu_custom_call.1} parent=5 // pred_check_branch
        %452 = sbr.rel (%p449) target = $region72
      $region71: #{tpu_custom_call.1} parent=5 // pred_region
        %s453 = ssub.s32 %s27, 1
        %s454 = sand.u32 %s40, 1
        %s455 = scalar_lea.sflag [#allocation4], %s454
        %s456 = sand.u32 %s40, 1
        %s457 = smul.addr %s456, 32
        %s458 = scalar_lea.vmem [#allocation3], %s457
        // Predicated region
        $region73: #{tpu_custom_call.1} parent=71 // pred_check
          %p459 = pneg %p53
        $region74: #{tpu_custom_call.1} parent=71 // pred_check_branch
          %461 = sbr.rel (%p459) target = $region76
        $region75: #{tpu_custom_call.1} parent=71 // pred_region
          %462 = dma.done %s455, 512
        $region76: #{tpu_custom_call.1} parent=71 // pred_fallthru
          _
        // Predicated region
        $region77: #{tpu_custom_call.1} parent=71 // pred_check
          %p463 = pneg %p74
        $region78: #{tpu_custom_call.1} parent=71 // pred_check_branch
          %465 = sbr.rel (%p463) target = $region80
        $region79: #{tpu_custom_call.1} parent=71 // pred_region
          %466 = dma.done [#allocation7], 12288
        $region80: #{tpu_custom_call.1} parent=71 // pred_fallthru
          _
        // Predicated region
        $region81: #{tpu_custom_call.1} parent=71 // pred_check
          %p467 = pneg %p116
        $region82: #{tpu_custom_call.1} parent=71 // pred_check_branch
          %469 = sbr.rel (%p467) target = $region84
        $region83: #{tpu_custom_call.1} parent=71 // pred_region
          %470 = dma.done [#allocation7], 4096
        $region84: #{tpu_custom_call.1} parent=71 // pred_fallthru
          _
        // Predicated region
        $region85: #{tpu_custom_call.1} parent=71 // pred_check
          %p471 = pneg %p242
        $region86: #{tpu_custom_call.1} parent=71 // pred_check_branch
          %473 = sbr.rel (%p471) target = $region88
        $region87: #{tpu_custom_call.1} parent=71 // pred_region
          %474 = dma.done [#allocation10], 8192
        $region88: #{tpu_custom_call.1} parent=71 // pred_fallthru
          _
        // Predicated region
        $region89: #{tpu_custom_call.1} parent=71 // pred_check
          %p475 = pneg %p284
        $region90: #{tpu_custom_call.1} parent=71 // pred_check_branch
          %477 = sbr.rel (%p475) target = $region92
        $region91: #{tpu_custom_call.1} parent=71 // pred_region
          %478 = dma.done [#allocation10], 8192
        $region92: #{tpu_custom_call.1} parent=71 // pred_fallthru
          _
        %s479 = sand.u32 %s40, 1
        %s480 = scalar_lea.sflag [#allocation4], %s479
        %s481 = sand.u32 %s40, 1
        %s482 = smul.addr %s481, 32
        %s483 = scalar_lea.vmem [#allocation3], %s482
        %p484 = pneg %p53
        %p485 = pneg %p50
        %p486 = pneg %p74
        %p487 = pneg %p71
        %p488 = pneg %p95
        %p489 = pneg %p92
        %p490 = pneg %p116
        %p491 = pneg %p113
        %p492 = pneg %p137
        %p493 = pneg %p134
        %p494 = pneg %p158
        %p495 = pneg %p155
        %p496 = pneg %p179
        %p497 = pneg %p176
        %p498 = pneg %p200
        %p499 = pneg %p197
        %p500 = pneg %p221
        %p501 = pneg %p218
        %p502 = pneg %p242
        %p503 = pneg %p239
        %p504 = pneg %p263
        %p505 = pneg %p260
        %p506 = pneg %p284
        %p507 = pneg %p281
        %p508 = pneg %p305
        %p509 = pneg %p302
        %p510 = pneg %p331
        %p511 = pneg %p328
        %s512 = sand.u32 %s318, 1
        %s513 = scalar_lea.sflag [#allocation5], %s512
        %s514 = sand.u32 %s318, 1
        %s515 = smul.addr %s514, 32
        %s516 = scalar_lea.vmem [#allocation12], %s515
        %v518 = vld [vmem:[%s458] sm:$0xff]
        %v519 = vld [vmem:[%s458 + $0x8] sm:$0xff]
        %v520 = vld [vmem:[%s458 + $0x10] sm:$0xff]
        %v521 = vld [vmem:[%s458 + $0x18] sm:$0xff]
        %v522 = vpack.c.bf16 %v520, %v518
        %v523 = vpack.c.bf16 %v521, %v519
        %v524 = vld [vmem:[#allocation6] sm:$0xff]
        %v525 = vld [vmem:[#allocation6 + $0x8] sm:$0xff]
        %v526 = vld [vmem:[#allocation6 + $0x10] sm:$0xff]
        %v527 = vld [vmem:[#allocation6 + $0x18] sm:$0xff]
        %v528 = vld [vmem:[#allocation6 + $0x20] sm:$0xff]
        %v529 = vld [vmem:[#allocation6 + $0x28] sm:$0xff]
        %v530 = vld [vmem:[#allocation6 + $0x30] sm:$0xff]
        %v531 = vld [vmem:[#allocation6 + $0x38] sm:$0xff]
        %v532 = vld [vmem:[#allocation6 + $0x40] sm:$0xff]
        %v533 = vld [vmem:[#allocation6 + $0x48] sm:$0xff]
        %v534 = vld [vmem:[#allocation6 + $0x50] sm:$0xff]
        %v535 = vld [vmem:[#allocation6 + $0x58] sm:$0xff]
        %v536 = vld [vmem:[#allocation6 + $0x60] sm:$0xff]
        %v537 = vld [vmem:[#allocation6 + $0x68] sm:$0xff]
        %v538 = vld [vmem:[#allocation6 + $0x70] sm:$0xff]
        %v539 = vld [vmem:[#allocation6 + $0x78] sm:$0xff]
        %v540 = vld [vmem:[#allocation6 + $0x80] sm:$0xff]
        %v541 = vld [vmem:[#allocation6 + $0x88] sm:$0xff]
        %v542 = vld [vmem:[#allocation6 + $0x90] sm:$0xff]
        %v543 = vld [vmem:[#allocation6 + $0x98] sm:$0xff]
        %v544 = vld [vmem:[#allocation6 + $0xa0] sm:$0xff]
        %v545 = vld [vmem:[#allocation6 + $0xa8] sm:$0xff]
        %v546 = vld [vmem:[#allocation6 + $0xb0] sm:$0xff]
        %v547 = vld [vmem:[#allocation6 + $0xb8] sm:$0xff]
        %v548 = vld [vmem:[#allocation6 + $0xc0] sm:$0xff]
        %v549 = vld [vmem:[#allocation6 + $0xc8] sm:$0xff]
        %v550 = vld [vmem:[#allocation6 + $0xd0] sm:$0xff]
        %v551 = vld [vmem:[#allocation6 + $0xd8] sm:$0xff]
        %v552 = vld [vmem:[#allocation6 + $0xe0] sm:$0xff]
        %v553 = vld [vmem:[#allocation6 + $0xe8] sm:$0xff]
        %v554 = vld [vmem:[#allocation6 + $0xf0] sm:$0xff]
        %v555 = vld [vmem:[#allocation6 + $0xf8] sm:$0xff]
        %v556 = vld [vmem:[#allocation6 + $0x100] sm:$0xff]
        %v557 = vld [vmem:[#allocation6 + $0x108] sm:$0xff]
        %v558 = vld [vmem:[#allocation6 + $0x110] sm:$0xff]
        %v559 = vld [vmem:[#allocation6 + $0x118] sm:$0xff]
        %v560 = vld [vmem:[#allocation6 + $0x120] sm:$0xff]
        %v561 = vld [vmem:[#allocation6 + $0x128] sm:$0xff]
        %v562 = vld [vmem:[#allocation6 + $0x130] sm:$0xff]
        %v563 = vld [vmem:[#allocation6 + $0x138] sm:$0xff]
        %v564 = vld [vmem:[#allocation6 + $0x140] sm:$0xff]
        %v565 = vld [vmem:[#allocation6 + $0x148] sm:$0xff]
        %v566 = vld [vmem:[#allocation6 + $0x150] sm:$0xff]
        %v567 = vld [vmem:[#allocation6 + $0x158] sm:$0xff]
        %v568 = vld [vmem:[#allocation6 + $0x160] sm:$0xff]
        %v569 = vld [vmem:[#allocation6 + $0x168] sm:$0xff]
        %v570 = vld [vmem:[#allocation6 + $0x170] sm:$0xff]
        %v571 = vld [vmem:[#allocation6 + $0x178] sm:$0xff]
        %v572 = vld [vmem:[#allocation6 + $0x180] sm:$0xff]
        %v573 = vld [vmem:[#allocation6 + $0x188] sm:$0xff]
        %v574 = vld [vmem:[#allocation6 + $0x190] sm:$0xff]
        %v575 = vld [vmem:[#allocation6 + $0x198] sm:$0xff]
        %v576 = vld [vmem:[#allocation6 + $0x1a0] sm:$0xff]
        %v577 = vld [vmem:[#allocation6 + $0x1a8] sm:$0xff]
        %v578 = vld [vmem:[#allocation6 + $0x1b0] sm:$0xff]
        %v579 = vld [vmem:[#allocation6 + $0x1b8] sm:$0xff]
        %v580 = vld [vmem:[#allocation6 + $0x1c0] sm:$0xff]
        %v581 = vld [vmem:[#allocation6 + $0x1c8] sm:$0xff]
        %v582 = vld [vmem:[#allocation6 + $0x1d0] sm:$0xff]
        %v583 = vld [vmem:[#allocation6 + $0x1d8] sm:$0xff]
        %v584 = vld [vmem:[#allocation6 + $0x1e0] sm:$0xff]
        %v585 = vld [vmem:[#allocation6 + $0x1e8] sm:$0xff]
        %v586 = vld [vmem:[#allocation6 + $0x1f0] sm:$0xff]
        %v587 = vld [vmem:[#allocation6 + $0x1f8] sm:$0xff]
        %v588 = vld [vmem:[#allocation6 + $0x200] sm:$0xff]
        %v589 = vld [vmem:[#allocation6 + $0x208] sm:$0xff]
        %v590 = vld [vmem:[#allocation6 + $0x210] sm:$0xff]
        %v591 = vld [vmem:[#allocation6 + $0x218] sm:$0xff]
        %v592 = vld [vmem:[#allocation6 + $0x220] sm:$0xff]
        %v593 = vld [vmem:[#allocation6 + $0x228] sm:$0xff]
        %v594 = vld [vmem:[#allocation6 + $0x230] sm:$0xff]
        %v595 = vld [vmem:[#allocation6 + $0x238] sm:$0xff]
        %v596 = vld [vmem:[#allocation6 + $0x240] sm:$0xff]
        %v597 = vld [vmem:[#allocation6 + $0x248] sm:$0xff]
        %v598 = vld [vmem:[#allocation6 + $0x250] sm:$0xff]
        %v599 = vld [vmem:[#allocation6 + $0x258] sm:$0xff]
        %v600 = vld [vmem:[#allocation6 + $0x260] sm:$0xff]
        %v601 = vld [vmem:[#allocation6 + $0x268] sm:$0xff]
        %v602 = vld [vmem:[#allocation6 + $0x270] sm:$0xff]
        %v603 = vld [vmem:[#allocation6 + $0x278] sm:$0xff]
        %v604 = vld [vmem:[#allocation6 + $0x280] sm:$0xff]
        %v605 = vld [vmem:[#allocation6 + $0x288] sm:$0xff]
        %v606 = vld [vmem:[#allocation6 + $0x290] sm:$0xff]
        %v607 = vld [vmem:[#allocation6 + $0x298] sm:$0xff]
        %v608 = vld [vmem:[#allocation6 + $0x2a0] sm:$0xff]
        %v609 = vld [vmem:[#allocation6 + $0x2a8] sm:$0xff]
        %v610 = vld [vmem:[#allocation6 + $0x2b0] sm:$0xff]
        %v611 = vld [vmem:[#allocation6 + $0x2b8] sm:$0xff]
        %v612 = vld [vmem:[#allocation6 + $0x2c0] sm:$0xff]
        %v613 = vld [vmem:[#allocation6 + $0x2c8] sm:$0xff]
        %v614 = vld [vmem:[#allocation6 + $0x2d0] sm:$0xff]
        %v615 = vld [vmem:[#allocation6 + $0x2d8] sm:$0xff]
        %v616 = vld [vmem:[#allocation6 + $0x2e0] sm:$0xff]
        %v617 = vld [vmem:[#allocation6 + $0x2e8] sm:$0xff]
        %v618 = vld [vmem:[#allocation6 + $0x2f0] sm:$0xff]
        %v619 = vld [vmem:[#allocation6 + $0x2f8] sm:$0xff]
        %v620 = vld [vmem:[%s2] sm:$0x3f]
        %v622 = vlaneseq
        %v623 = vshrl.u32 %v622, 7
        %v624 = vsub.s32 0, %v623
        %v625 = vrot.slane %v620, %v624
        %v626 = vlaneseq
        %v627 = vshrl.u32 %v626, 7
        %v628 = vsub.s32 1, %v627
        %v629 = vrot.slane %v620, %v628
        %v630 = vlaneseq
        %v631 = vshrl.u32 %v630, 7
        %v632 = vsub.s32 2, %v631
        %v633 = vrot.slane %v620, %v632
        %v634 = vlaneseq
        %v635 = vshrl.u32 %v634, 7
        %v636 = vsub.s32 3, %v635
        %v637 = vrot.slane %v620, %v636
        %v638 = vlaneseq
        %v639 = vshrl.u32 %v638, 7
        %v640 = vsub.s32 4, %v639
        %v641 = vrot.slane %v620, %v640
        %v642 = vlaneseq
        %v643 = vshrl.u32 %v642, 7
        %v644 = vsub.s32 5, %v643
        %v645 = vrot.slane %v620, %v644
        %v748 = vunpack.c.l.b16 %v524
        %v749 = vunpack.c.h.b16 %v524
        %v750 = vunpack.c.l.b16 %v525
        %v751 = vunpack.c.h.b16 %v525
        %v752 = vunpack.c.l.b16 %v526
        %v753 = vunpack.c.h.b16 %v526
        %v754 = vunpack.c.l.b16 %v527
        %v755 = vunpack.c.h.b16 %v527
        %v756 = vunpack.c.l.b16 %v528
        %v757 = vunpack.c.h.b16 %v528
        %v758 = vunpack.c.l.b16 %v529
        %v759 = vunpack.c.h.b16 %v529
        %v760 = vunpack.c.l.b16 %v530
        %v761 = vunpack.c.h.b16 %v530
        %v762 = vunpack.c.l.b16 %v531
        %v763 = vunpack.c.h.b16 %v531
        %v764 = vunpack.c.l.b16 %v532
        %v765 = vunpack.c.h.b16 %v532
        %v766 = vunpack.c.l.b16 %v533
        %v767 = vunpack.c.h.b16 %v533
        %v768 = vunpack.c.l.b16 %v534
        %v769 = vunpack.c.h.b16 %v534
        %v770 = vunpack.c.l.b16 %v535
        %v771 = vunpack.c.h.b16 %v535
        %v772 = vunpack.c.l.b16 %v536
        %v773 = vunpack.c.h.b16 %v536
        %v774 = vunpack.c.l.b16 %v537
        %v775 = vunpack.c.h.b16 %v537
        %v776 = vunpack.c.l.b16 %v538
        %v777 = vunpack.c.h.b16 %v538
        %v778 = vunpack.c.l.b16 %v539
        %v779 = vunpack.c.h.b16 %v539
        %v780 = vunpack.c.l.b16 %v540
        %v781 = vunpack.c.h.b16 %v540
        %v782 = vunpack.c.l.b16 %v541
        %v783 = vunpack.c.h.b16 %v541
        %v784 = vunpack.c.l.b16 %v542
        %v785 = vunpack.c.h.b16 %v542
        %v786 = vunpack.c.l.b16 %v543
        %v787 = vunpack.c.h.b16 %v543
        %v788 = vunpack.c.l.b16 %v544
        %v789 = vunpack.c.h.b16 %v544
        %v790 = vunpack.c.l.b16 %v545
        %v791 = vunpack.c.h.b16 %v545
        %v792 = vunpack.c.l.b16 %v546
        %v793 = vunpack.c.h.b16 %v546
        %v794 = vunpack.c.l.b16 %v547
        %v795 = vunpack.c.h.b16 %v547
        %v796 = vunpack.c.l.b16 %v548
        %v797 = vunpack.c.h.b16 %v548
        %v798 = vunpack.c.l.b16 %v549
        %v799 = vunpack.c.h.b16 %v549
        %v800 = vunpack.c.l.b16 %v550
        %v801 = vunpack.c.h.b16 %v550
        %v802 = vunpack.c.l.b16 %v551
        %v803 = vunpack.c.h.b16 %v551
        %v804 = vunpack.c.l.b16 %v552
        %v805 = vunpack.c.h.b16 %v552
        %v806 = vunpack.c.l.b16 %v553
        %v807 = vunpack.c.h.b16 %v553
        %v808 = vunpack.c.l.b16 %v554
        %v809 = vunpack.c.h.b16 %v554
        %v810 = vunpack.c.l.b16 %v555
        %v811 = vunpack.c.h.b16 %v555
        %v812 = vunpack.c.l.b16 %v556
        %v813 = vunpack.c.h.b16 %v556
        %v814 = vunpack.c.l.b16 %v557
        %v815 = vunpack.c.h.b16 %v557
        %v816 = vunpack.c.l.b16 %v558
        %v817 = vunpack.c.h.b16 %v558
        %v818 = vunpack.c.l.b16 %v559
        %v819 = vunpack.c.h.b16 %v559
        %v820 = vunpack.c.l.b16 %v560
        %v821 = vunpack.c.h.b16 %v560
        %v822 = vunpack.c.l.b16 %v561
        %v823 = vunpack.c.h.b16 %v561
        %v824 = vunpack.c.l.b16 %v562
        %v825 = vunpack.c.h.b16 %v562
        %v826 = vunpack.c.l.b16 %v563
        %v827 = vunpack.c.h.b16 %v563
        %v828 = vunpack.c.l.b16 %v564
        %v829 = vunpack.c.h.b16 %v564
        %v830 = vunpack.c.l.b16 %v565
        %v831 = vunpack.c.h.b16 %v565
        %v832 = vunpack.c.l.b16 %v566
        %v833 = vunpack.c.h.b16 %v566
        %v834 = vunpack.c.l.b16 %v567
        %v835 = vunpack.c.h.b16 %v567
        %v836 = vunpack.c.l.b16 %v568
        %v837 = vunpack.c.h.b16 %v568
        %v838 = vunpack.c.l.b16 %v569
        %v839 = vunpack.c.h.b16 %v569
        %v840 = vunpack.c.l.b16 %v570
        %v841 = vunpack.c.h.b16 %v570
        %v842 = vunpack.c.l.b16 %v571
        %v843 = vunpack.c.h.b16 %v571
        %v844 = vunpack.c.l.b16 %v572
        %v845 = vunpack.c.h.b16 %v572
        %v846 = vunpack.c.l.b16 %v573
        %v847 = vunpack.c.h.b16 %v573
        %v848 = vunpack.c.l.b16 %v574
        %v849 = vunpack.c.h.b16 %v574
        %v850 = vunpack.c.l.b16 %v575
        %v851 = vunpack.c.h.b16 %v575
        %v852 = vunpack.c.l.b16 %v576
        %v853 = vunpack.c.h.b16 %v576
        %v854 = vunpack.c.l.b16 %v577
        %v855 = vunpack.c.h.b16 %v577
        %v856 = vunpack.c.l.b16 %v578
        %v857 = vunpack.c.h.b16 %v578
        %v858 = vunpack.c.l.b16 %v579
        %v859 = vunpack.c.h.b16 %v579
        %v860 = vunpack.c.l.b16 %v580
        %v861 = vunpack.c.h.b16 %v580
        %v862 = vunpack.c.l.b16 %v581
        %v863 = vunpack.c.h.b16 %v581
        %v864 = vunpack.c.l.b16 %v582
        %v865 = vunpack.c.h.b16 %v582
        %v866 = vunpack.c.l.b16 %v583
        %v867 = vunpack.c.h.b16 %v583
        %v868 = vunpack.c.l.b16 %v584
        %v869 = vunpack.c.h.b16 %v584
        %v870 = vunpack.c.l.b16 %v585
        %v871 = vunpack.c.h.b16 %v585
        %v872 = vunpack.c.l.b16 %v586
        %v873 = vunpack.c.h.b16 %v586
        %v874 = vunpack.c.l.b16 %v587
        %v875 = vunpack.c.h.b16 %v587
        %v876 = vunpack.c.l.b16 %v588
        %v877 = vunpack.c.h.b16 %v588
        %v878 = vunpack.c.l.b16 %v589
        %v879 = vunpack.c.h.b16 %v589
        %v880 = vunpack.c.l.b16 %v590
        %v881 = vunpack.c.h.b16 %v590
        %v882 = vunpack.c.l.b16 %v591
        %v883 = vunpack.c.h.b16 %v591
        %v884 = vunpack.c.l.b16 %v592
        %v885 = vunpack.c.h.b16 %v592
        %v886 = vunpack.c.l.b16 %v593
        %v887 = vunpack.c.h.b16 %v593
        %v888 = vunpack.c.l.b16 %v594
        %v889 = vunpack.c.h.b16 %v594
        %v890 = vunpack.c.l.b16 %v595
        %v891 = vunpack.c.h.b16 %v595
        %v892 = vunpack.c.l.b16 %v596
        %v893 = vunpack.c.h.b16 %v596
        %v894 = vunpack.c.l.b16 %v597
        %v895 = vunpack.c.h.b16 %v597
        %v896 = vunpack.c.l.b16 %v598
        %v897 = vunpack.c.h.b16 %v598
        %v898 = vunpack.c.l.b16 %v599
        %v899 = vunpack.c.h.b16 %v599
        %v900 = vunpack.c.l.b16 %v600
        %v901 = vunpack.c.h.b16 %v600
        %v902 = vunpack.c.l.b16 %v601
        %v903 = vunpack.c.h.b16 %v601
        %v904 = vunpack.c.l.b16 %v602
        %v905 = vunpack.c.h.b16 %v602
        %v906 = vunpack.c.l.b16 %v603
        %v907 = vunpack.c.h.b16 %v603
        %v908 = vunpack.c.l.b16 %v604
        %v909 = vunpack.c.h.b16 %v604
        %v910 = vunpack.c.l.b16 %v605
        %v911 = vunpack.c.h.b16 %v605
        %v912 = vunpack.c.l.b16 %v606
        %v913 = vunpack.c.h.b16 %v606
        %v914 = vunpack.c.l.b16 %v607
        %v915 = vunpack.c.h.b16 %v607
        %v916 = vunpack.c.l.b16 %v608
        %v917 = vunpack.c.h.b16 %v608
        %v918 = vunpack.c.l.b16 %v609
        %v919 = vunpack.c.h.b16 %v609
        %v920 = vunpack.c.l.b16 %v610
        %v921 = vunpack.c.h.b16 %v610
        %v922 = vunpack.c.l.b16 %v611
        %v923 = vunpack.c.h.b16 %v611
        %v924 = vunpack.c.l.b16 %v612
        %v925 = vunpack.c.h.b16 %v612
        %v926 = vunpack.c.l.b16 %v613
        %v927 = vunpack.c.h.b16 %v613
        %v928 = vunpack.c.l.b16 %v614
        %v929 = vunpack.c.h.b16 %v614
        %v930 = vunpack.c.l.b16 %v615
        %v931 = vunpack.c.h.b16 %v615
        %v932 = vunpack.c.l.b16 %v616
        %v933 = vunpack.c.h.b16 %v616
        %v934 = vunpack.c.l.b16 %v617
        %v935 = vunpack.c.h.b16 %v617
        %v936 = vunpack.c.l.b16 %v618
        %v937 = vunpack.c.h.b16 %v618
        %v938 = vunpack.c.l.b16 %v619
        %v939 = vunpack.c.h.b16 %v619
        %v940 = vpack.c.b16 %v754, %v748
        %v941 = vpack.c.b16 %v755, %v749
        %v942 = vpack.c.b16 %v756, %v750
        %v943 = vpack.c.b16 %v757, %v751
        %v944 = vpack.c.b16 %v758, %v752
        %v945 = vpack.c.b16 %v759, %v753
        %v946 = vpack.c.b16 %v766, %v760
        %v947 = vpack.c.b16 %v767, %v761
        %v948 = vpack.c.b16 %v768, %v762
        %v949 = vpack.c.b16 %v769, %v763
        %v950 = vpack.c.b16 %v770, %v764
        %v951 = vpack.c.b16 %v771, %v765
        %v952 = vpack.c.b16 %v778, %v772
        %v953 = vpack.c.b16 %v779, %v773
        %v954 = vpack.c.b16 %v780, %v774
        %v955 = vpack.c.b16 %v781, %v775
        %v956 = vpack.c.b16 %v782, %v776
        %v957 = vpack.c.b16 %v783, %v777
        %v958 = vpack.c.b16 %v790, %v784
        %v959 = vpack.c.b16 %v791, %v785
        %v960 = vpack.c.b16 %v792, %v786
        %v961 = vpack.c.b16 %v793, %v787
        %v962 = vpack.c.b16 %v794, %v788
        %v963 = vpack.c.b16 %v795, %v789
        %v964 = vpack.c.b16 %v802, %v796
        %v965 = vpack.c.b16 %v803, %v797
        %v966 = vpack.c.b16 %v804, %v798
        %v967 = vpack.c.b16 %v805, %v799
        %v968 = vpack.c.b16 %v806, %v800
        %v969 = vpack.c.b16 %v807, %v801
        %v970 = vpack.c.b16 %v814, %v808
        %v971 = vpack.c.b16 %v815, %v809
        %v972 = vpack.c.b16 %v816, %v810
        %v973 = vpack.c.b16 %v817, %v811
        %v974 = vpack.c.b16 %v818, %v812
        %v975 = vpack.c.b16 %v819, %v813
        %v976 = vpack.c.b16 %v826, %v820
        %v977 = vpack.c.b16 %v827, %v821
        %v978 = vpack.c.b16 %v828, %v822
        %v979 = vpack.c.b16 %v829, %v823
        %v980 = vpack.c.b16 %v830, %v824
        %v981 = vpack.c.b16 %v831, %v825
        %v982 = vpack.c.b16 %v838, %v832
        %v983 = vpack.c.b16 %v839, %v833
        %v984 = vpack.c.b16 %v840, %v834
        %v985 = vpack.c.b16 %v841, %v835
        %v986 = vpack.c.b16 %v842, %v836
        %v987 = vpack.c.b16 %v843, %v837
        %v988 = vpack.c.b16 %v850, %v844
        %v989 = vpack.c.b16 %v851, %v845
        %v990 = vpack.c.b16 %v852, %v846
        %v991 = vpack.c.b16 %v853, %v847
        %v992 = vpack.c.b16 %v854, %v848
        %v993 = vpack.c.b16 %v855, %v849
        %v994 = vpack.c.b16 %v862, %v856
        %v995 = vpack.c.b16 %v863, %v857
        %v996 = vpack.c.b16 %v864, %v858
        %v997 = vpack.c.b16 %v865, %v859
        %v998 = vpack.c.b16 %v866, %v860
        %v999 = vpack.c.b16 %v867, %v861
        %v1000 = vpack.c.b16 %v874, %v868
        %v1001 = vpack.c.b16 %v875, %v869
        %v1002 = vpack.c.b16 %v876, %v870
        %v1003 = vpack.c.b16 %v877, %v871
        %v1004 = vpack.c.b16 %v878, %v872
        %v1005 = vpack.c.b16 %v879, %v873
        %v1006 = vpack.c.b16 %v886, %v880
        %v1007 = vpack.c.b16 %v887, %v881
        %v1008 = vpack.c.b16 %v888, %v882
        %v1009 = vpack.c.b16 %v889, %v883
        %v1010 = vpack.c.b16 %v890, %v884
        %v1011 = vpack.c.b16 %v891, %v885
        %v1012 = vpack.c.b16 %v898, %v892
        %v1013 = vpack.c.b16 %v899, %v893
        %v1014 = vpack.c.b16 %v900, %v894
        %v1015 = vpack.c.b16 %v901, %v895
        %v1016 = vpack.c.b16 %v902, %v896
        %v1017 = vpack.c.b16 %v903, %v897
        %v1018 = vpack.c.b16 %v910, %v904
        %v1019 = vpack.c.b16 %v911, %v905
        %v1020 = vpack.c.b16 %v912, %v906
        %v1021 = vpack.c.b16 %v913, %v907
        %v1022 = vpack.c.b16 %v914, %v908
        %v1023 = vpack.c.b16 %v915, %v909
        %v1024 = vpack.c.b16 %v922, %v916
        %v1025 = vpack.c.b16 %v923, %v917
        %v1026 = vpack.c.b16 %v924, %v918
        %v1027 = vpack.c.b16 %v925, %v919
        %v1028 = vpack.c.b16 %v926, %v920
        %v1029 = vpack.c.b16 %v927, %v921
        %v1030 = vpack.c.b16 %v934, %v928
        %v1031 = vpack.c.b16 %v935, %v929
        %v1032 = vpack.c.b16 %v936, %v930
        %v1033 = vpack.c.b16 %v937, %v931
        %v1034 = vpack.c.b16 %v938, %v932
        %v1035 = vpack.c.b16 %v939, %v933
        %1132 = vmatprep.subr.bf16.mxu0 %v941
        %1133 = vmatpush1.bf16.msra.mxu0 %v940
        %1134 = vmatprep.subr.bf16.mxu0 %v947
        %1135 = vmatpush1.bf16.msra.mxu0 %v946
        %1136 = vmatprep.subr.bf16.mxu0 %v953
        %1137 = vmatpush1.bf16.msra.mxu0 %v952
        %1138 = vmatprep.subr.bf16.mxu0 %v959
        %1139 = vmatpush1.bf16.msra.mxu0 %v958
        %1140 = vmatprep.subr.bf16.mxu0 %v965
        %1141 = vmatpush1.bf16.msra.mxu0 %v964
        %1142 = vmatprep.subr.bf16.mxu0 %v971
        %1143 = vmatpush1.bf16.msra.mxu0 %v970
        %1144 = vmatprep.subr.bf16.mxu0 %v977
        %1145 = vmatpush1.bf16.msra.mxu0 %v976
        %1146 = vmatprep.subr.bf16.mxu0 %v983
        %1147 = vmatpush1.bf16.msra.mxu0 %v982
        %1148 = vmatprep.subr.bf16.mxu0 %v989
        %1149 = vmatpush1.bf16.msra.mxu0 %v988
        %1150 = vmatprep.subr.bf16.mxu0 %v995
        %1151 = vmatpush1.bf16.msra.mxu0 %v994
        %1152 = vmatprep.subr.bf16.mxu0 %v1001
        %1153 = vmatpush1.bf16.msra.mxu0 %v1000
        %1154 = vmatprep.subr.bf16.mxu0 %v1007
        %1155 = vmatpush1.bf16.msra.mxu0 %v1006
        %1156 = vmatprep.subr.bf16.mxu0 %v1013
        %1157 = vmatpush1.bf16.msra.mxu0 %v1012
        %1158 = vmatprep.subr.bf16.mxu0 %v1019
        %1159 = vmatpush1.bf16.msra.mxu0 %v1018
        %1160 = vmatprep.subr.bf16.mxu0 %v1025
        %1161 = vmatpush1.bf16.msra.mxu0 %v1024
        %1162 = vmatprep.subr.bf16.mxu0 %v1031
        %1163 = vmatpush1.bf16.msra.mxu0 %v1030
        %1164 = vmatprep.mubr.bf16.mxu0 %v523
        %1165 = vmatmul.mubr.bf16.gmra.mrb[0].mxu0 %v522
        %v1166 = vpop.f32.mrb[0].mxu0
        %v1167 = vadd.f32 %v625, %v1166
        %v1168 = vpop.f32.mrb[0].mxu0
        %v1169 = vadd.f32 %v629, %v1168
        %v1170 = vpop.f32.mrb[0].mxu0
        %v1171 = vadd.f32 %v625, %v1170
        %v1172 = vpop.f32.mrb[0].mxu0
        %v1173 = vadd.f32 %v629, %v1172
        %1174 = vdwg.mxu0
        %1175 = vmatprep.subr.bf16.mxu0 %v943
        %1176 = vmatpush1.bf16.msra.mxu0 %v942
        %1177 = vmatprep.subr.bf16.mxu0 %v949
        %1178 = vmatpush1.bf16.msra.mxu0 %v948
        %1179 = vmatprep.subr.bf16.mxu0 %v955
        %1180 = vmatpush1.bf16.msra.mxu0 %v954
        %1181 = vmatprep.subr.bf16.mxu0 %v961
        %1182 = vmatpush1.bf16.msra.mxu0 %v960
        %1183 = vmatprep.subr.bf16.mxu0 %v967
        %1184 = vmatpush1.bf16.msra.mxu0 %v966
        %1185 = vmatprep.subr.bf16.mxu0 %v973
        %1186 = vmatpush1.bf16.msra.mxu0 %v972
        %1187 = vmatprep.subr.bf16.mxu0 %v979
        %1188 = vmatpush1.bf16.msra.mxu0 %v978
        %1189 = vmatprep.subr.bf16.mxu0 %v985
        %1190 = vmatpush1.bf16.msra.mxu0 %v984
        %1191 = vmatprep.subr.bf16.mxu0 %v991
        %1192 = vmatpush1.bf16.msra.mxu0 %v990
        %1193 = vmatprep.subr.bf16.mxu0 %v997
        %1194 = vmatpush1.bf16.msra.mxu0 %v996
        %1195 = vmatprep.subr.bf16.mxu0 %v1003
        %1196 = vmatpush1.bf16.msra.mxu0 %v1002
        %1197 = vmatprep.subr.bf16.mxu0 %v1009
        %1198 = vmatpush1.bf16.msra.mxu0 %v1008
        %1199 = vmatprep.subr.bf16.mxu0 %v1015
        %1200 = vmatpush1.bf16.msra.mxu0 %v1014
        %1201 = vmatprep.subr.bf16.mxu0 %v1021
        %1202 = vmatpush1.bf16.msra.mxu0 %v1020
        %1203 = vmatprep.subr.bf16.mxu0 %v1027
        %1204 = vmatpush1.bf16.msra.mxu0 %v1026
        %1205 = vmatprep.subr.bf16.mxu0 %v1033
        %1206 = vmatpush1.bf16.msra.mxu0 %v1032
        %1207 = vmatprep.mubr.bf16.mxu0 %v523
        %1208 = vmatmul.mubr.bf16.gmra.mrb[0].mxu0 %v522
        %v1209 = vpop.f32.mrb[0].mxu0
        %v1210 = vadd.f32 %v633, %v1209
        %v1211 = vpop.f32.mrb[0].mxu0
        %v1212 = vadd.f32 %v637, %v1211
        %v1213 = vpop.f32.mrb[0].mxu0
        %v1214 = vadd.f32 %v633, %v1213
        %v1215 = vpop.f32.mrb[0].mxu0
        %v1216 = vadd.f32 %v637, %v1215
        %1217 = vdwg.mxu0
        %1218 = vmatprep.subr.bf16.mxu0 %v945
        %1219 = vmatpush1.bf16.msra.mxu0 %v944
        %1220 = vmatprep.subr.bf16.mxu0 %v951
        %1221 = vmatpush1.bf16.msra.mxu0 %v950
        %1222 = vmatprep.subr.bf16.mxu0 %v957
        %1223 = vmatpush1.bf16.msra.mxu0 %v956
        %1224 = vmatprep.subr.bf16.mxu0 %v963
        %1225 = vmatpush1.bf16.msra.mxu0 %v962
        %1226 = vmatprep.subr.bf16.mxu0 %v969
        %1227 = vmatpush1.bf16.msra.mxu0 %v968
        %1228 = vmatprep.subr.bf16.mxu0 %v975
        %1229 = vmatpush1.bf16.msra.mxu0 %v974
        %1230 = vmatprep.subr.bf16.mxu0 %v981
        %1231 = vmatpush1.bf16.msra.mxu0 %v980
        %1232 = vmatprep.subr.bf16.mxu0 %v987
        %1233 = vmatpush1.bf16.msra.mxu0 %v986
        %1234 = vmatprep.subr.bf16.mxu0 %v993
        %1235 = vmatpush1.bf16.msra.mxu0 %v992
        %1236 = vmatprep.subr.bf16.mxu0 %v999
        %1237 = vmatpush1.bf16.msra.mxu0 %v998
        %1238 = vmatprep.subr.bf16.mxu0 %v1005
        %1239 = vmatpush1.bf16.msra.mxu0 %v1004
        %1240 = vmatprep.subr.bf16.mxu0 %v1011
        %1241 = vmatpush1.bf16.msra.mxu0 %v1010
        %1242 = vmatprep.subr.bf16.mxu0 %v1017
        %1243 = vmatpush1.bf16.msra.mxu0 %v1016
        %1244 = vmatprep.subr.bf16.mxu0 %v1023
        %1245 = vmatpush1.bf16.msra.mxu0 %v1022
        %1246 = vmatprep.subr.bf16.mxu0 %v1029
        %1247 = vmatpush1.bf16.msra.mxu0 %v1028
        %1248 = vmatprep.subr.bf16.mxu0 %v1035
        %1249 = vmatpush1.bf16.msra.mxu0 %v1034
        %1250 = vmatprep.mubr.bf16.mxu0 %v523
        %1251 = vmatmul.mubr.bf16.gmra.mrb[0].mxu0 %v522
        %v1252 = vpop.f32.mrb[0].mxu0
        %v1253 = vadd.f32 %v641, %v1252
        %v1254 = vpop.f32.mrb[0].mxu0
        %v1255 = vadd.f32 %v645, %v1254
        %v1256 = vpop.f32.mrb[0].mxu0
        %v1257 = vadd.f32 %v641, %v1256
        %v1258 = vpop.f32.mrb[0].mxu0
        %v1259 = vadd.f32 %v645, %v1258
        %1260 = vdwg.mxu0
        %v1261 = vpack.c.bf16 %v1171, %v1167
        %v1262 = vpack.c.bf16 %v1214, %v1210
        %v1263 = vpack.c.bf16 %v1257, %v1253
        %1264 = vmatprep.subr.bf16.mxu0 0
        %1265 = vmatpush1.bf16.xpose.msra.mxu0 %v1262
        %1266 = vmatprep.subr.bf16.mxu0 0
        %1267 = vmatpush1.bf16.xpose.msra.mxu0 0
        %1268 = vmatprep.subr.bf16.mxu0 0
        %1269 = vmatpush1.bf16.xpose.msra.mxu0 0
        %1270 = vmatprep.subr.bf16.mxu0 0
        %1271 = vmatpush1.bf16.xpose.msra.mxu0 0
        %1272 = vmatprep.subr.bf16.mxu0 0
        %1273 = vmatpush1.bf16.xpose.msra.mxu0 0
        %1274 = vmatprep.subr.bf16.mxu0 0
        %1275 = vmatpush1.bf16.xpose.msra.mxu0 0
        %1276 = vmatprep.subr.bf16.mxu0 0
        %1277 = vmatpush1.bf16.xpose.msra.mxu0 0
        %1278 = vmatprep.subr.bf16.mxu0 0
        %1279 = vmatpush1.bf16.xpose.msra.mxu0 0
        %1280 = vmatprep.subr.bf16.mxu0 0
        %1281 = vmatpush1.bf16.xpose.msra.mxu0 0
        %1282 = vmatprep.subr.bf16.mxu0 0
        %1283 = vmatpush1.bf16.xpose.msra.mxu0 0
        %1284 = vmatprep.subr.bf16.mxu0 0
        %1285 = vmatpush1.bf16.xpose.msra.mxu0 0
        %1286 = vmatprep.subr.bf16.mxu0 0
        %1287 = vmatpush1.bf16.xpose.msra.mxu0 0
        %1288 = vmatprep.subr.bf16.mxu0 0
        %1289 = vmatpush1.bf16.xpose.msra.mxu0 0
        %1290 = vmatprep.subr.bf16.mxu0 0
        %1291 = vmatpush1.bf16.xpose.msra.mxu0 0
        %1292 = vmatprep.subr.bf16.mxu0 0
        %1293 = vmatpush1.bf16.xpose.msra.mxu0 0
        %1294 = vmatprep.subr.bf16.mxu0 0
        %1295 = vmatpush1.bf16.xpose.msra.mxu0 0
        %1296 = vmatprep.mubr.bf16.mxu0 0
        %1297 = vmatmul.mubr.bf16.gmra.mrb[0].mxu0 %v1261
        %v1298 = vpop.f32.mrb[0].mxu0
        %v1299 = vadd.f32 0.0, %v1298
        %v1300 = vpop.f32.mrb[0].mxu0
        %v1301 = vpop.f32.mrb[0].mxu0
        %v1302 = vadd.f32 0.0, %v1301
        %v1303 = vpop.f32.mrb[0].mxu0
        %1304 = vdwg.mxu0
        %vm1305 = vcmask 130048
        %v1306 = vsel %vm1305, %v1299, -inf
        %1307 = vmax.xlane.f32.xlu0 %v1306
        %v1308 = vpop.xlane.xlu0 %1307
        %v1309 = vsel %vm1305, %v1302, -inf
        %1310 = vmax.xlane.f32.xlu0 %v1309
        %v1311 = vpop.xlane.xlu0 %1310
        %v1312 = vsub.f32 %v1299, %v1308
        %v1313 = vsub.f32 %v1302, %v1311
        %v1314 = vmul.f32 %v1312, 1.442695
        %v1315 = vpow.pop %v1314
        %v1316 = vmul.f32 %v1313, 1.442695
        %v1317 = vpow.pop %v1316
        %v1318 = vsel %vm1305, %v1315, 0.0
        %1319 = vadd.xlane.f32.xlu0 %v1318
        %v1320 = vpop.xlane.xlu0 %1319
        %v1321 = vsel %vm1305, %v1317, 0.0
        %1322 = vadd.xlane.f32.xlu0 %v1321
        %v1323 = vpop.xlane.xlu0 %1322
        %v1324 = vpack.c.bf16 %v1317, %v1315
        %v1326 = vsel %vm1305, %v1324, 0
        %1328 = vmatprep.subr.bf16.mxu0 0
        %1329 = vmatpush1.bf16.msra.mxu0 %v1263
        %1330 = vmatprep.subr.bf16.mxu0 0
        %1331 = vmatpush1.bf16.msra.mxu0 0
        %1332 = vmatprep.subr.bf16.mxu0 0
        %1333 = vmatpush1.bf16.msra.mxu0 0
        %1334 = vmatprep.subr.bf16.mxu0 0
        %1335 = vmatpush1.bf16.msra.mxu0 0
        %1336 = vmatprep.subr.bf16.mxu0 0
        %1337 = vmatpush1.bf16.msra.mxu0 0
        %1338 = vmatprep.subr.bf16.mxu0 0
        %1339 = vmatpush1.bf16.msra.mxu0 0
        %1340 = vmatprep.subr.bf16.mxu0 0
        %1341 = vmatpush1.bf16.msra.mxu0 0
        %1342 = vmatprep.subr.bf16.mxu0 0
        %1343 = vmatpush1.bf16.msra.mxu0 0
        %1344 = vmatprep.subr.bf16.mxu0 0
        %1345 = vmatpush1.bf16.msra.mxu0 0
        %1346 = vmatprep.subr.bf16.mxu0 0
        %1347 = vmatpush1.bf16.msra.mxu0 0
        %1348 = vmatprep.subr.bf16.mxu0 0
        %1349 = vmatpush1.bf16.msra.mxu0 0
        %1350 = vmatprep.subr.bf16.mxu0 0
        %1351 = vmatpush1.bf16.msra.mxu0 0
        %1352 = vmatprep.subr.bf16.mxu0 0
        %1353 = vmatpush1.bf16.msra.mxu0 0
        %1354 = vmatprep.subr.bf16.mxu0 0
        %1355 = vmatpush1.bf16.msra.mxu0 0
        %1356 = vmatprep.subr.bf16.mxu0 0
        %1357 = vmatpush1.bf16.msra.mxu0 0
        %1358 = vmatprep.subr.bf16.mxu0 0
        %1359 = vmatpush1.bf16.msra.mxu0 0
        %1360 = vmatprep.mubr.bf16.mxu0 0
        %1361 = vmatmul.mubr.bf16.gmra.mrb[0].mxu0 %v1326
        %v1362 = vpop.f32.mrb[0].mxu0
        %v1363 = vadd.f32 0.0, %v1362
        %v1364 = vpop.f32.mrb[0].mxu0
        %v1365 = vpop.f32.mrb[0].mxu0
        %v1366 = vadd.f32 0.0, %v1365
        %v1367 = vpop.f32.mrb[0].mxu0
        %1368 = vdwg.mxu0
        %v1369 = vrcp.pop %v1320
        %v1370 = vrcp.pop %v1323
        %v1371 = vmul.f32 %v1363, %v1369
        %v1372 = vmul.f32 %v1366, %v1370
        %v1373 = vpack.c.bf16 %v1372, %v1371
        %1374 = vst [vmem:[#allocation2] sm:$0xff] %v1373
        %v1375 = vpack.c.bf16 %v1173, %v1169
        %v1376 = vpack.c.bf16 %v1216, %v1212
        %v1377 = vpack.c.bf16 %v1259, %v1255
        %1378 = vmatprep.subr.bf16.mxu0 0
        %1379 = vmatpush1.bf16.xpose.msra.mxu0 %v1376
        %1380 = vmatprep.subr.bf16.mxu0 0
        %1381 = vmatpush1.bf16.xpose.msra.mxu0 0
        %1382 = vmatprep.subr.bf16.mxu0 0
        %1383 = vmatpush1.bf16.xpose.msra.mxu0 0
        %1384 = vmatprep.subr.bf16.mxu0 0
        %1385 = vmatpush1.bf16.xpose.msra.mxu0 0
        %1386 = vmatprep.subr.bf16.mxu0 0
        %1387 = vmatpush1.bf16.xpose.msra.mxu0 0
        %1388 = vmatprep.subr.bf16.mxu0 0
        %1389 = vmatpush1.bf16.xpose.msra.mxu0 0
        %1390 = vmatprep.subr.bf16.mxu0 0
        %1391 = vmatpush1.bf16.xpose.msra.mxu0 0
        %1392 = vmatprep.subr.bf16.mxu0 0
        %1393 = vmatpush1.bf16.xpose.msra.mxu0 0
        %1394 = vmatprep.subr.bf16.mxu0 0
        %1395 = vmatpush1.bf16.xpose.msra.mxu0 0
        %1396 = vmatprep.subr.bf16.mxu0 0
        %1397 = vmatpush1.bf16.xpose.msra.mxu0 0
        %1398 = vmatprep.subr.bf16.mxu0 0
        %1399 = vmatpush1.bf16.xpose.msra.mxu0 0
        %1400 = vmatprep.subr.bf16.mxu0 0
        %1401 = vmatpush1.bf16.xpose.msra.mxu0 0
        %1402 = vmatprep.subr.bf16.mxu0 0
        %1403 = vmatpush1.bf16.xpose.msra.mxu0 0
        %1404 = vmatprep.subr.bf16.mxu0 0
        %1405 = vmatpush1.bf16.xpose.msra.mxu0 0
        %1406 = vmatprep.subr.bf16.mxu0 0
        %1407 = vmatpush1.bf16.xpose.msra.mxu0 0
        %1408 = vmatprep.subr.bf16.mxu0 0
        %1409 = vmatpush1.bf16.xpose.msra.mxu0 0
        %1410 = vmatprep.mubr.bf16.mxu0 0
        %1411 = vmatmul.mubr.bf16.gmra.mrb[0].mxu0 %v1375
        %v1412 = vpop.f32.mrb[0].mxu0
        %v1413 = vadd.f32 0.0, %v1412
        %v1414 = vpop.f32.mrb[0].mxu0
        %v1415 = vpop.f32.mrb[0].mxu0
        %v1416 = vadd.f32 0.0, %v1415
        %v1417 = vpop.f32.mrb[0].mxu0
        %1418 = vdwg.mxu0
        %v1419 = vsel %vm1305, %v1413, -inf
        %1420 = vmax.xlane.f32.xlu0 %v1419
        %v1421 = vpop.xlane.xlu0 %1420
        %v1422 = vsel %vm1305, %v1416, -inf
        %1423 = vmax.xlane.f32.xlu0 %v1422
        %v1424 = vpop.xlane.xlu0 %1423
        %v1425 = vsub.f32 %v1413, %v1421
        %v1426 = vsub.f32 %v1416, %v1424
        %v1427 = vmul.f32 %v1425, 1.442695
        %v1428 = vpow.pop %v1427
        %v1429 = vmul.f32 %v1426, 1.442695
        %v1430 = vpow.pop %v1429
        %v1431 = vsel %vm1305, %v1428, 0.0
        %1432 = vadd.xlane.f32.xlu0 %v1431
        %v1433 = vpop.xlane.xlu0 %1432
        %v1434 = vsel %vm1305, %v1430, 0.0
        %1435 = vadd.xlane.f32.xlu0 %v1434
        %v1436 = vpop.xlane.xlu0 %1435
        %v1437 = vpack.c.bf16 %v1430, %v1428
        %v1439 = vsel %vm1305, %v1437, 0
        %1441 = vmatprep.subr.bf16.mxu0 0
        %1442 = vmatpush1.bf16.msra.mxu0 %v1377
        %1443 = vmatprep.subr.bf16.mxu0 0
        %1444 = vmatpush1.bf16.msra.mxu0 0
        %1445 = vmatprep.subr.bf16.mxu0 0
        %1446 = vmatpush1.bf16.msra.mxu0 0
        %1447 = vmatprep.subr.bf16.mxu0 0
        %1448 = vmatpush1.bf16.msra.mxu0 0
        %1449 = vmatprep.subr.bf16.mxu0 0
        %1450 = vmatpush1.bf16.msra.mxu0 0
        %1451 = vmatprep.subr.bf16.mxu0 0
        %1452 = vmatpush1.bf16.msra.mxu0 0
        %1453 = vmatprep.subr.bf16.mxu0 0
        %1454 = vmatpush1.bf16.msra.mxu0 0
        %1455 = vmatprep.subr.bf16.mxu0 0
        %1456 = vmatpush1.bf16.msra.mxu0 0
        %1457 = vmatprep.subr.bf16.mxu0 0
        %1458 = vmatpush1.bf16.msra.mxu0 0
        %1459 = vmatprep.subr.bf16.mxu0 0
        %1460 = vmatpush1.bf16.msra.mxu0 0
        %1461 = vmatprep.subr.bf16.mxu0 0
        %1462 = vmatpush1.bf16.msra.mxu0 0
        %1463 = vmatprep.subr.bf16.mxu0 0
        %1464 = vmatpush1.bf16.msra.mxu0 0
        %1465 = vmatprep.subr.bf16.mxu0 0
        %1466 = vmatpush1.bf16.msra.mxu0 0
        %1467 = vmatprep.subr.bf16.mxu0 0
        %1468 = vmatpush1.bf16.msra.mxu0 0
        %1469 = vmatprep.subr.bf16.mxu0 0
        %1470 = vmatpush1.bf16.msra.mxu0 0
        %1471 = vmatprep.subr.bf16.mxu0 0
        %1472 = vmatpush1.bf16.msra.mxu0 0
        %1473 = vmatprep.mubr.bf16.mxu0 0
        %1474 = vmatmul.mubr.bf16.gmra.mrb[0].mxu0 %v1439
        %v1475 = vpop.f32.mrb[0].mxu0
        %v1476 = vadd.f32 0.0, %v1475
        %v1477 = vpop.f32.mrb[0].mxu0
        %v1478 = vpop.f32.mrb[0].mxu0
        %v1479 = vadd.f32 0.0, %v1478
        %v1480 = vpop.f32.mrb[0].mxu0
        %1481 = vdwg.mxu0
        %v1482 = vrcp.pop %v1433
        %v1483 = vrcp.pop %v1436
        %v1484 = vmul.f32 %v1476, %v1482
        %v1485 = vmul.f32 %v1479, %v1483
        %v1486 = vpack.c.bf16 %v1485, %v1484
        %1487 = vst [vmem:[#allocation2 + $0x8] sm:$0xff] %v1486
        %v1488 = vld [vmem:[#allocation2] sm:$0xff]
        %v1489 = vld [vmem:[#allocation2 + $0x8] sm:$0xff]
        %v1490 = vld [vmem:[#allocation8] sm:$0xff]
        %v1491 = vld [vmem:[#allocation8 + $0x8] sm:$0xff]
        %v1492 = vld [vmem:[#allocation8 + $0x10] sm:$0xff]
        %v1493 = vld [vmem:[#allocation8 + $0x18] sm:$0xff]
        %v1494 = vld [vmem:[#allocation8 + $0x20] sm:$0xff]
        %v1495 = vld [vmem:[#allocation8 + $0x28] sm:$0xff]
        %v1496 = vld [vmem:[#allocation8 + $0x30] sm:$0xff]
        %v1497 = vld [vmem:[#allocation8 + $0x38] sm:$0xff]
        %v1498 = vld [vmem:[#allocation8 + $0x40] sm:$0xff]
        %v1499 = vld [vmem:[#allocation8 + $0x48] sm:$0xff]
        %v1500 = vld [vmem:[#allocation8 + $0x50] sm:$0xff]
        %v1501 = vld [vmem:[#allocation8 + $0x58] sm:$0xff]
        %v1502 = vld [vmem:[#allocation8 + $0x60] sm:$0xff]
        %v1503 = vld [vmem:[#allocation8 + $0x68] sm:$0xff]
        %v1504 = vld [vmem:[#allocation8 + $0x70] sm:$0xff]
        %v1505 = vld [vmem:[#allocation8 + $0x78] sm:$0xff]
        %v1506 = vld [vmem:[#allocation8 + $0x80] sm:$0xff]
        %v1507 = vld [vmem:[#allocation8 + $0x88] sm:$0xff]
        %v1508 = vld [vmem:[#allocation8 + $0x90] sm:$0xff]
        %v1509 = vld [vmem:[#allocation8 + $0x98] sm:$0xff]
        %v1510 = vld [vmem:[#allocation8 + $0xa0] sm:$0xff]
        %v1511 = vld [vmem:[#allocation8 + $0xa8] sm:$0xff]
        %v1512 = vld [vmem:[#allocation8 + $0xb0] sm:$0xff]
        %v1513 = vld [vmem:[#allocation8 + $0xb8] sm:$0xff]
        %v1514 = vld [vmem:[#allocation8 + $0xc0] sm:$0xff]
        %v1515 = vld [vmem:[#allocation8 + $0xc8] sm:$0xff]
        %v1516 = vld [vmem:[#allocation8 + $0xd0] sm:$0xff]
        %v1517 = vld [vmem:[#allocation8 + $0xd8] sm:$0xff]
        %v1518 = vld [vmem:[#allocation8 + $0xe0] sm:$0xff]
        %v1519 = vld [vmem:[#allocation8 + $0xe8] sm:$0xff]
        %v1520 = vld [vmem:[#allocation8 + $0xf0] sm:$0xff]
        %v1521 = vld [vmem:[#allocation8 + $0xf8] sm:$0xff]
        %v1522 = vld [vmem:[%s4] sm:$0x3]
        %v1524 = vlaneseq
        %v1525 = vshrl.u32 %v1524, 7
        %v1526 = vsub.s32 0, %v1525
        %v1527 = vrot.slane %v1522, %v1526
        %v1528 = vlaneseq
        %v1529 = vshrl.u32 %v1528, 7
        %v1530 = vsub.s32 1, %v1529
        %v1531 = vrot.slane %v1522, %v1530
        %v1566 = vunpack.c.l.b16 %v1490
        %v1567 = vunpack.c.h.b16 %v1490
        %v1568 = vunpack.c.l.b16 %v1491
        %v1569 = vunpack.c.h.b16 %v1491
        %v1570 = vunpack.c.l.b16 %v1492
        %v1571 = vunpack.c.h.b16 %v1492
        %v1572 = vunpack.c.l.b16 %v1493
        %v1573 = vunpack.c.h.b16 %v1493
        %v1574 = vunpack.c.l.b16 %v1494
        %v1575 = vunpack.c.h.b16 %v1494
        %v1576 = vunpack.c.l.b16 %v1495
        %v1577 = vunpack.c.h.b16 %v1495
        %v1578 = vunpack.c.l.b16 %v1496
        %v1579 = vunpack.c.h.b16 %v1496
        %v1580 = vunpack.c.l.b16 %v1497
        %v1581 = vunpack.c.h.b16 %v1497
        %v1582 = vunpack.c.l.b16 %v1498
        %v1583 = vunpack.c.h.b16 %v1498
        %v1584 = vunpack.c.l.b16 %v1499
        %v1585 = vunpack.c.h.b16 %v1499
        %v1586 = vunpack.c.l.b16 %v1500
        %v1587 = vunpack.c.h.b16 %v1500
        %v1588 = vunpack.c.l.b16 %v1501
        %v1589 = vunpack.c.h.b16 %v1501
        %v1590 = vunpack.c.l.b16 %v1502
        %v1591 = vunpack.c.h.b16 %v1502
        %v1592 = vunpack.c.l.b16 %v1503
        %v1593 = vunpack.c.h.b16 %v1503
        %v1594 = vunpack.c.l.b16 %v1504
        %v1595 = vunpack.c.h.b16 %v1504
        %v1596 = vunpack.c.l.b16 %v1505
        %v1597 = vunpack.c.h.b16 %v1505
        %v1598 = vunpack.c.l.b16 %v1506
        %v1599 = vunpack.c.h.b16 %v1506
        %v1600 = vunpack.c.l.b16 %v1507
        %v1601 = vunpack.c.h.b16 %v1507
        %v1602 = vunpack.c.l.b16 %v1508
        %v1603 = vunpack.c.h.b16 %v1508
        %v1604 = vunpack.c.l.b16 %v1509
        %v1605 = vunpack.c.h.b16 %v1509
        %v1606 = vunpack.c.l.b16 %v1510
        %v1607 = vunpack.c.h.b16 %v1510
        %v1608 = vunpack.c.l.b16 %v1511
        %v1609 = vunpack.c.h.b16 %v1511
        %v1610 = vunpack.c.l.b16 %v1512
        %v1611 = vunpack.c.h.b16 %v1512
        %v1612 = vunpack.c.l.b16 %v1513
        %v1613 = vunpack.c.h.b16 %v1513
        %v1614 = vunpack.c.l.b16 %v1514
        %v1615 = vunpack.c.h.b16 %v1514
        %v1616 = vunpack.c.l.b16 %v1515
        %v1617 = vunpack.c.h.b16 %v1515
        %v1618 = vunpack.c.l.b16 %v1516
        %v1619 = vunpack.c.h.b16 %v1516
        %v1620 = vunpack.c.l.b16 %v1517
        %v1621 = vunpack.c.h.b16 %v1517
        %v1622 = vunpack.c.l.b16 %v1518
        %v1623 = vunpack.c.h.b16 %v1518
        %v1624 = vunpack.c.l.b16 %v1519
        %v1625 = vunpack.c.h.b16 %v1519
        %v1626 = vunpack.c.l.b16 %v1520
        %v1627 = vunpack.c.h.b16 %v1520
        %v1628 = vunpack.c.l.b16 %v1521
        %v1629 = vunpack.c.h.b16 %v1521
        %v1630 = vpack.c.b16 %v1568, %v1566
        %v1631 = vpack.c.b16 %v1569, %v1567
        %v1632 = vpack.c.b16 %v1572, %v1570
        %v1633 = vpack.c.b16 %v1573, %v1571
        %v1634 = vpack.c.b16 %v1576, %v1574
        %v1635 = vpack.c.b16 %v1577, %v1575
        %v1636 = vpack.c.b16 %v1580, %v1578
        %v1637 = vpack.c.b16 %v1581, %v1579
        %v1638 = vpack.c.b16 %v1584, %v1582
        %v1639 = vpack.c.b16 %v1585, %v1583
        %v1640 = vpack.c.b16 %v1588, %v1586
        %v1641 = vpack.c.b16 %v1589, %v1587
        %v1642 = vpack.c.b16 %v1592, %v1590
        %v1643 = vpack.c.b16 %v1593, %v1591
        %v1644 = vpack.c.b16 %v1596, %v1594
        %v1645 = vpack.c.b16 %v1597, %v1595
        %v1646 = vpack.c.b16 %v1600, %v1598
        %v1647 = vpack.c.b16 %v1601, %v1599
        %v1648 = vpack.c.b16 %v1604, %v1602
        %v1649 = vpack.c.b16 %v1605, %v1603
        %v1650 = vpack.c.b16 %v1608, %v1606
        %v1651 = vpack.c.b16 %v1609, %v1607
        %v1652 = vpack.c.b16 %v1612, %v1610
        %v1653 = vpack.c.b16 %v1613, %v1611
        %v1654 = vpack.c.b16 %v1616, %v1614
        %v1655 = vpack.c.b16 %v1617, %v1615
        %v1656 = vpack.c.b16 %v1620, %v1618
        %v1657 = vpack.c.b16 %v1621, %v1619
        %v1658 = vpack.c.b16 %v1624, %v1622
        %v1659 = vpack.c.b16 %v1625, %v1623
        %v1660 = vpack.c.b16 %v1628, %v1626
        %v1661 = vpack.c.b16 %v1629, %v1627
        %1694 = vmatprep.subr.bf16.mxu0 %v1631
        %1695 = vmatpush1.bf16.msra.mxu0 %v1630
        %1696 = vmatprep.subr.bf16.mxu0 %v1633
        %1697 = vmatpush1.bf16.msra.mxu0 %v1632
        %1698 = vmatprep.subr.bf16.mxu0 %v1635
        %1699 = vmatpush1.bf16.msra.mxu0 %v1634
        %1700 = vmatprep.subr.bf16.mxu0 %v1637
        %1701 = vmatpush1.bf16.msra.mxu0 %v1636
        %1702 = vmatprep.subr.bf16.mxu0 %v1639
        %1703 = vmatpush1.bf16.msra.mxu0 %v1638
        %1704 = vmatprep.subr.bf16.mxu0 %v1641
        %1705 = vmatpush1.bf16.msra.mxu0 %v1640
        %1706 = vmatprep.subr.bf16.mxu0 %v1643
        %1707 = vmatpush1.bf16.msra.mxu0 %v1642
        %1708 = vmatprep.subr.bf16.mxu0 %v1645
        %1709 = vmatpush1.bf16.msra.mxu0 %v1644
        %1710 = vmatprep.subr.bf16.mxu0 %v1647
        %1711 = vmatpush1.bf16.msra.mxu0 %v1646
        %1712 = vmatprep.subr.bf16.mxu0 %v1649
        %1713 = vmatpush1.bf16.msra.mxu0 %v1648
        %1714 = vmatprep.subr.bf16.mxu0 %v1651
        %1715 = vmatpush1.bf16.msra.mxu0 %v1650
        %1716 = vmatprep.subr.bf16.mxu0 %v1653
        %1717 = vmatpush1.bf16.msra.mxu0 %v1652
        %1718 = vmatprep.subr.bf16.mxu0 %v1655
        %1719 = vmatpush1.bf16.msra.mxu0 %v1654
        %1720 = vmatprep.subr.bf16.mxu0 %v1657
        %1721 = vmatpush1.bf16.msra.mxu0 %v1656
        %1722 = vmatprep.subr.bf16.mxu0 %v1659
        %1723 = vmatpush1.bf16.msra.mxu0 %v1658
        %1724 = vmatprep.subr.bf16.mxu0 %v1661
        %1725 = vmatpush1.bf16.msra.mxu0 %v1660
        %1726 = vmatprep.mubr.bf16.mxu0 %v1489
        %1727 = vmatmul.mubr.bf16.gmra.mrb[0].mxu0 %v1488
        %v1728 = vpop.f32.mrb[0].mxu0
        %v1729 = vadd.f32 %v1527, %v1728
        %v1730 = vpop.f32.mrb[0].mxu0
        %v1731 = vadd.f32 %v1531, %v1730
        %v1732 = vpop.f32.mrb[0].mxu0
        %v1733 = vadd.f32 %v1527, %v1732
        %v1734 = vpop.f32.mrb[0].mxu0
        %v1735 = vadd.f32 %v1531, %v1734
        %1736 = vdwg.mxu0
        %v1737 = vadd.f32 %v518, %v1729
        %v1738 = vadd.f32 %v519, %v1731
        %v1739 = vadd.f32 %v520, %v1733
        %v1740 = vadd.f32 %v521, %v1735
        %v1741 = vld [vmem:[%s5] sm:$0x3]
        %v1742 = vld [vmem:[%s6] sm:$0x3]
        %v1743 = vadd.f32 %v1737, %v1738
        %1744 = vadd.xlane.f32.xlu0 %v1743
        %v1745 = vpop.xlane.xlu0 %1744
        %v1746 = vadd.f32 %v1739, %v1740
        %1747 = vadd.xlane.f32.xlu0 %v1746
        %v1748 = vpop.xlane.xlu0 %1747
        %v1749 = vrcp.pop 256.0
        %v1750 = vmul.f32 %v1745, %v1749
        %v1751 = vmul.f32 %v1748, %v1749
        %v1752 = vsub.f32 %v1737, %v1750
        %v1753 = vsub.f32 %v1738, %v1750
        %v1754 = vsub.f32 %v1739, %v1751
        %v1755 = vsub.f32 %v1740, %v1751
        %v1756 = vmul.f32 %v1752, %v1752
        %v1757 = vmul.f32 %v1753, %v1753
        %v1758 = vmul.f32 %v1754, %v1754
        %v1759 = vmul.f32 %v1755, %v1755
        %v1760 = vadd.f32 %v1756, %v1757
        %1761 = vadd.xlane.f32.xlu0 %v1760
        %v1762 = vpop.xlane.xlu0 %1761
        %v1763 = vadd.f32 %v1758, %v1759
        %1764 = vadd.xlane.f32.xlu0 %v1763
        %v1765 = vpop.xlane.xlu0 %1764
        %v1766 = vmul.f32 %v1762, %v1749
        %v1767 = vmul.f32 %v1765, %v1749
        %v1768 = vadd.f32 %v1766, 1e-05
        %v1769 = vadd.f32 %v1767, 1e-05
        %v1770 = vrsqrt.pop %v1768
        %v1771 = vrsqrt.pop %v1769
        %v1772 = vmul.f32 %v1752, %v1770
        %v1773 = vmul.f32 %v1753, %v1770
        %v1774 = vmul.f32 %v1754, %v1771
        %v1775 = vmul.f32 %v1755, %v1771
        %v1777 = vlaneseq
        %v1778 = vshrl.u32 %v1777, 7
        %v1779 = vsub.s32 0, %v1778
        %v1780 = vrot.slane %v1741, %v1779
        %v1781 = vlaneseq
        %v1782 = vshrl.u32 %v1781, 7
        %v1783 = vsub.s32 1, %v1782
        %v1784 = vrot.slane %v1741, %v1783
        %v1787 = vmul.f32 %v1772, %v1780
        %v1788 = vmul.f32 %v1773, %v1784
        %v1789 = vmul.f32 %v1774, %v1780
        %v1790 = vmul.f32 %v1775, %v1784
        %v1792 = vlaneseq
        %v1793 = vshrl.u32 %v1792, 7
        %v1794 = vsub.s32 0, %v1793
        %v1795 = vrot.slane %v1742, %v1794
        %v1796 = vlaneseq
        %v1797 = vshrl.u32 %v1796, 7
        %v1798 = vsub.s32 1, %v1797
        %v1799 = vrot.slane %v1742, %v1798
        %v1802 = vadd.f32 %v1787, %v1795
        %v1803 = vadd.f32 %v1788, %v1799
        %v1804 = vadd.f32 %v1789, %v1795
        %v1805 = vadd.f32 %v1790, %v1799
        %v1806 = vpack.c.bf16 %v1804, %v1802
        %v1807 = vpack.c.bf16 %v1805, %v1803
        %v1808 = vld [vmem:[#allocation9] sm:$0xff]
        %v1809 = vld [vmem:[#allocation9 + $0x8] sm:$0xff]
        %v1810 = vld [vmem:[#allocation9 + $0x10] sm:$0xff]
        %v1811 = vld [vmem:[#allocation9 + $0x18] sm:$0xff]
        %v1812 = vld [vmem:[#allocation9 + $0x20] sm:$0xff]
        %v1813 = vld [vmem:[#allocation9 + $0x28] sm:$0xff]
        %v1814 = vld [vmem:[#allocation9 + $0x30] sm:$0xff]
        %v1815 = vld [vmem:[#allocation9 + $0x38] sm:$0xff]
        %v1816 = vld [vmem:[#allocation9 + $0x40] sm:$0xff]
        %v1817 = vld [vmem:[#allocation9 + $0x48] sm:$0xff]
        %v1818 = vld [vmem:[#allocation9 + $0x50] sm:$0xff]
        %v1819 = vld [vmem:[#allocation9 + $0x58] sm:$0xff]
        %v1820 = vld [vmem:[#allocation9 + $0x60] sm:$0xff]
        %v1821 = vld [vmem:[#allocation9 + $0x68] sm:$0xff]
        %v1822 = vld [vmem:[#allocation9 + $0x70] sm:$0xff]
        %v1823 = vld [vmem:[#allocation9 + $0x78] sm:$0xff]
        %v1824 = vld [vmem:[#allocation9 + $0x80] sm:$0xff]
        %v1825 = vld [vmem:[#allocation9 + $0x88] sm:$0xff]
        %v1826 = vld [vmem:[#allocation9 + $0x90] sm:$0xff]
        %v1827 = vld [vmem:[#allocation9 + $0x98] sm:$0xff]
        %v1828 = vld [vmem:[#allocation9 + $0xa0] sm:$0xff]
        %v1829 = vld [vmem:[#allocation9 + $0xa8] sm:$0xff]
        %v1830 = vld [vmem:[#allocation9 + $0xb0] sm:$0xff]
        %v1831 = vld [vmem:[#allocation9 + $0xb8] sm:$0xff]
        %v1832 = vld [vmem:[#allocation9 + $0xc0] sm:$0xff]
        %v1833 = vld [vmem:[#allocation9 + $0xc8] sm:$0xff]
        %v1834 = vld [vmem:[#allocation9 + $0xd0] sm:$0xff]
        %v1835 = vld [vmem:[#allocation9 + $0xd8] sm:$0xff]
        %v1836 = vld [vmem:[#allocation9 + $0xe0] sm:$0xff]
        %v1837 = vld [vmem:[#allocation9 + $0xe8] sm:$0xff]
        %v1838 = vld [vmem:[#allocation9 + $0xf0] sm:$0xff]
        %v1839 = vld [vmem:[#allocation9 + $0xf8] sm:$0xff]
        %v1840 = vld [vmem:[#allocation9 + $0x100] sm:$0xff]
        %v1841 = vld [vmem:[#allocation9 + $0x108] sm:$0xff]
        %v1842 = vld [vmem:[#allocation9 + $0x110] sm:$0xff]
        %v1843 = vld [vmem:[#allocation9 + $0x118] sm:$0xff]
        %v1844 = vld [vmem:[#allocation9 + $0x120] sm:$0xff]
        %v1845 = vld [vmem:[#allocation9 + $0x128] sm:$0xff]
        %v1846 = vld [vmem:[#allocation9 + $0x130] sm:$0xff]
        %v1847 = vld [vmem:[#allocation9 + $0x138] sm:$0xff]
        %v1848 = vld [vmem:[#allocation9 + $0x140] sm:$0xff]
        %v1849 = vld [vmem:[#allocation9 + $0x148] sm:$0xff]
        %v1850 = vld [vmem:[#allocation9 + $0x150] sm:$0xff]
        %v1851 = vld [vmem:[#allocation9 + $0x158] sm:$0xff]
        %v1852 = vld [vmem:[#allocation9 + $0x160] sm:$0xff]
        %v1853 = vld [vmem:[#allocation9 + $0x168] sm:$0xff]
        %v1854 = vld [vmem:[#allocation9 + $0x170] sm:$0xff]
        %v1855 = vld [vmem:[#allocation9 + $0x178] sm:$0xff]
        %v1856 = vld [vmem:[#allocation9 + $0x180] sm:$0xff]
        %v1857 = vld [vmem:[#allocation9 + $0x188] sm:$0xff]
        %v1858 = vld [vmem:[#allocation9 + $0x190] sm:$0xff]
        %v1859 = vld [vmem:[#allocation9 + $0x198] sm:$0xff]
        %v1860 = vld [vmem:[#allocation9 + $0x1a0] sm:$0xff]
        %v1861 = vld [vmem:[#allocation9 + $0x1a8] sm:$0xff]
        %v1862 = vld [vmem:[#allocation9 + $0x1b0] sm:$0xff]
        %v1863 = vld [vmem:[#allocation9 + $0x1b8] sm:$0xff]
        %v1864 = vld [vmem:[#allocation9 + $0x1c0] sm:$0xff]
        %v1865 = vld [vmem:[#allocation9 + $0x1c8] sm:$0xff]
        %v1866 = vld [vmem:[#allocation9 + $0x1d0] sm:$0xff]
        %v1867 = vld [vmem:[#allocation9 + $0x1d8] sm:$0xff]
        %v1868 = vld [vmem:[#allocation9 + $0x1e0] sm:$0xff]
        %v1869 = vld [vmem:[#allocation9 + $0x1e8] sm:$0xff]
        %v1870 = vld [vmem:[#allocation9 + $0x1f0] sm:$0xff]
        %v1871 = vld [vmem:[#allocation9 + $0x1f8] sm:$0xff]
        %v1872 = vld [vmem:[%s10] sm:$0xf]
        %v1874 = vlaneseq
        %v1875 = vshrl.u32 %v1874, 7
        %v1876 = vsub.s32 0, %v1875
        %v1877 = vrot.slane %v1872, %v1876
        %v1878 = vlaneseq
        %v1879 = vshrl.u32 %v1878, 7
        %v1880 = vsub.s32 1, %v1879
        %v1881 = vrot.slane %v1872, %v1880
        %v1882 = vlaneseq
        %v1883 = vshrl.u32 %v1882, 7
        %v1884 = vsub.s32 2, %v1883
        %v1885 = vrot.slane %v1872, %v1884
        %v1886 = vlaneseq
        %v1887 = vshrl.u32 %v1886, 7
        %v1888 = vsub.s32 3, %v1887
        %v1889 = vrot.slane %v1872, %v1888
        %v1958 = vunpack.c.l.b16 %v1808
        %v1959 = vunpack.c.h.b16 %v1808
        %v1960 = vunpack.c.l.b16 %v1809
        %v1961 = vunpack.c.h.b16 %v1809
        %v1962 = vunpack.c.l.b16 %v1810
        %v1963 = vunpack.c.h.b16 %v1810
        %v1964 = vunpack.c.l.b16 %v1811
        %v1965 = vunpack.c.h.b16 %v1811
        %v1966 = vunpack.c.l.b16 %v1812
        %v1967 = vunpack.c.h.b16 %v1812
        %v1968 = vunpack.c.l.b16 %v1813
        %v1969 = vunpack.c.h.b16 %v1813
        %v1970 = vunpack.c.l.b16 %v1814
        %v1971 = vunpack.c.h.b16 %v1814
        %v1972 = vunpack.c.l.b16 %v1815
        %v1973 = vunpack.c.h.b16 %v1815
        %v1974 = vunpack.c.l.b16 %v1816
        %v1975 = vunpack.c.h.b16 %v1816
        %v1976 = vunpack.c.l.b16 %v1817
        %v1977 = vunpack.c.h.b16 %v1817
        %v1978 = vunpack.c.l.b16 %v1818
        %v1979 = vunpack.c.h.b16 %v1818
        %v1980 = vunpack.c.l.b16 %v1819
        %v1981 = vunpack.c.h.b16 %v1819
        %v1982 = vunpack.c.l.b16 %v1820
        %v1983 = vunpack.c.h.b16 %v1820
        %v1984 = vunpack.c.l.b16 %v1821
        %v1985 = vunpack.c.h.b16 %v1821
        %v1986 = vunpack.c.l.b16 %v1822
        %v1987 = vunpack.c.h.b16 %v1822
        %v1988 = vunpack.c.l.b16 %v1823
        %v1989 = vunpack.c.h.b16 %v1823
        %v1990 = vunpack.c.l.b16 %v1824
        %v1991 = vunpack.c.h.b16 %v1824
        %v1992 = vunpack.c.l.b16 %v1825
        %v1993 = vunpack.c.h.b16 %v1825
        %v1994 = vunpack.c.l.b16 %v1826
        %v1995 = vunpack.c.h.b16 %v1826
        %v1996 = vunpack.c.l.b16 %v1827
        %v1997 = vunpack.c.h.b16 %v1827
        %v1998 = vunpack.c.l.b16 %v1828
        %v1999 = vunpack.c.h.b16 %v1828
        %v2000 = vunpack.c.l.b16 %v1829
        %v2001 = vunpack.c.h.b16 %v1829
        %v2002 = vunpack.c.l.b16 %v1830
        %v2003 = vunpack.c.h.b16 %v1830
        %v2004 = vunpack.c.l.b16 %v1831
        %v2005 = vunpack.c.h.b16 %v1831
        %v2006 = vunpack.c.l.b16 %v1832
        %v2007 = vunpack.c.h.b16 %v1832
        %v2008 = vunpack.c.l.b16 %v1833
        %v2009 = vunpack.c.h.b16 %v1833
        %v2010 = vunpack.c.l.b16 %v1834
        %v2011 = vunpack.c.h.b16 %v1834
        %v2012 = vunpack.c.l.b16 %v1835
        %v2013 = vunpack.c.h.b16 %v1835
        %v2014 = vunpack.c.l.b16 %v1836
        %v2015 = vunpack.c.h.b16 %v1836
        %v2016 = vunpack.c.l.b16 %v1837
        %v2017 = vunpack.c.h.b16 %v1837
        %v2018 = vunpack.c.l.b16 %v1838
        %v2019 = vunpack.c.h.b16 %v1838
        %v2020 = vunpack.c.l.b16 %v1839
        %v2021 = vunpack.c.h.b16 %v1839
        %v2022 = vunpack.c.l.b16 %v1840
        %v2023 = vunpack.c.h.b16 %v1840
        %v2024 = vunpack.c.l.b16 %v1841
        %v2025 = vunpack.c.h.b16 %v1841
        %v2026 = vunpack.c.l.b16 %v1842
        %v2027 = vunpack.c.h.b16 %v1842
        %v2028 = vunpack.c.l.b16 %v1843
        %v2029 = vunpack.c.h.b16 %v1843
        %v2030 = vunpack.c.l.b16 %v1844
        %v2031 = vunpack.c.h.b16 %v1844
        %v2032 = vunpack.c.l.b16 %v1845
        %v2033 = vunpack.c.h.b16 %v1845
        %v2034 = vunpack.c.l.b16 %v1846
        %v2035 = vunpack.c.h.b16 %v1846
        %v2036 = vunpack.c.l.b16 %v1847
        %v2037 = vunpack.c.h.b16 %v1847
        %v2038 = vunpack.c.l.b16 %v1848
        %v2039 = vunpack.c.h.b16 %v1848
        %v2040 = vunpack.c.l.b16 %v1849
        %v2041 = vunpack.c.h.b16 %v1849
        %v2042 = vunpack.c.l.b16 %v1850
        %v2043 = vunpack.c.h.b16 %v1850
        %v2044 = vunpack.c.l.b16 %v1851
        %v2045 = vunpack.c.h.b16 %v1851
        %v2046 = vunpack.c.l.b16 %v1852
        %v2047 = vunpack.c.h.b16 %v1852
        %v2048 = vunpack.c.l.b16 %v1853
        %v2049 = vunpack.c.h.b16 %v1853
        %v2050 = vunpack.c.l.b16 %v1854
        %v2051 = vunpack.c.h.b16 %v1854
        %v2052 = vunpack.c.l.b16 %v1855
        %v2053 = vunpack.c.h.b16 %v1855
        %v2054 = vunpack.c.l.b16 %v1856
        %v2055 = vunpack.c.h.b16 %v1856
        %v2056 = vunpack.c.l.b16 %v1857
        %v2057 = vunpack.c.h.b16 %v1857
        %v2058 = vunpack.c.l.b16 %v1858
        %v2059 = vunpack.c.h.b16 %v1858
        %v2060 = vunpack.c.l.b16 %v1859
        %v2061 = vunpack.c.h.b16 %v1859
        %v2062 = vunpack.c.l.b16 %v1860
        %v2063 = vunpack.c.h.b16 %v1860
        %v2064 = vunpack.c.l.b16 %v1861
        %v2065 = vunpack.c.h.b16 %v1861
        %v2066 = vunpack.c.l.b16 %v1862
        %v2067 = vunpack.c.h.b16 %v1862
        %v2068 = vunpack.c.l.b16 %v1863
        %v2069 = vunpack.c.h.b16 %v1863
        %v2070 = vunpack.c.l.b16 %v1864
        %v2071 = vunpack.c.h.b16 %v1864
        %v2072 = vunpack.c.l.b16 %v1865
        %v2073 = vunpack.c.h.b16 %v1865
        %v2074 = vunpack.c.l.b16 %v1866
        %v2075 = vunpack.c.h.b16 %v1866
        %v2076 = vunpack.c.l.b16 %v1867
        %v2077 = vunpack.c.h.b16 %v1867
        %v2078 = vunpack.c.l.b16 %v1868
        %v2079 = vunpack.c.h.b16 %v1868
        %v2080 = vunpack.c.l.b16 %v1869
        %v2081 = vunpack.c.h.b16 %v1869
        %v2082 = vunpack.c.l.b16 %v1870
        %v2083 = vunpack.c.h.b16 %v1870
        %v2084 = vunpack.c.l.b16 %v1871
        %v2085 = vunpack.c.h.b16 %v1871
        %v2086 = vpack.c.b16 %v1962, %v1958
        %v2087 = vpack.c.b16 %v1963, %v1959
        %v2088 = vpack.c.b16 %v1964, %v1960
        %v2089 = vpack.c.b16 %v1965, %v1961
        %v2090 = vpack.c.b16 %v1970, %v1966
        %v2091 = vpack.c.b16 %v1971, %v1967
        %v2092 = vpack.c.b16 %v1972, %v1968
        %v2093 = vpack.c.b16 %v1973, %v1969
        %v2094 = vpack.c.b16 %v1978, %v1974
        %v2095 = vpack.c.b16 %v1979, %v1975
        %v2096 = vpack.c.b16 %v1980, %v1976
        %v2097 = vpack.c.b16 %v1981, %v1977
        %v2098 = vpack.c.b16 %v1986, %v1982
        %v2099 = vpack.c.b16 %v1987, %v1983
        %v2100 = vpack.c.b16 %v1988, %v1984
        %v2101 = vpack.c.b16 %v1989, %v1985
        %v2102 = vpack.c.b16 %v1994, %v1990
        %v2103 = vpack.c.b16 %v1995, %v1991
        %v2104 = vpack.c.b16 %v1996, %v1992
        %v2105 = vpack.c.b16 %v1997, %v1993
        %v2106 = vpack.c.b16 %v2002, %v1998
        %v2107 = vpack.c.b16 %v2003, %v1999
        %v2108 = vpack.c.b16 %v2004, %v2000
        %v2109 = vpack.c.b16 %v2005, %v2001
        %v2110 = vpack.c.b16 %v2010, %v2006
        %v2111 = vpack.c.b16 %v2011, %v2007
        %v2112 = vpack.c.b16 %v2012, %v2008
        %v2113 = vpack.c.b16 %v2013, %v2009
        %v2114 = vpack.c.b16 %v2018, %v2014
        %v2115 = vpack.c.b16 %v2019, %v2015
        %v2116 = vpack.c.b16 %v2020, %v2016
        %v2117 = vpack.c.b16 %v2021, %v2017
        %v2118 = vpack.c.b16 %v2026, %v2022
        %v2119 = vpack.c.b16 %v2027, %v2023
        %v2120 = vpack.c.b16 %v2028, %v2024
        %v2121 = vpack.c.b16 %v2029, %v2025
        %v2122 = vpack.c.b16 %v2034, %v2030
        %v2123 = vpack.c.b16 %v2035, %v2031
        %v2124 = vpack.c.b16 %v2036, %v2032
        %v2125 = vpack.c.b16 %v2037, %v2033
        %v2126 = vpack.c.b16 %v2042, %v2038
        %v2127 = vpack.c.b16 %v2043, %v2039
        %v2128 = vpack.c.b16 %v2044, %v2040
        %v2129 = vpack.c.b16 %v2045, %v2041
        %v2130 = vpack.c.b16 %v2050, %v2046
        %v2131 = vpack.c.b16 %v2051, %v2047
        %v2132 = vpack.c.b16 %v2052, %v2048
        %v2133 = vpack.c.b16 %v2053, %v2049
        %v2134 = vpack.c.b16 %v2058, %v2054
        %v2135 = vpack.c.b16 %v2059, %v2055
        %v2136 = vpack.c.b16 %v2060, %v2056
        %v2137 = vpack.c.b16 %v2061, %v2057
        %v2138 = vpack.c.b16 %v2066, %v2062
        %v2139 = vpack.c.b16 %v2067, %v2063
        %v2140 = vpack.c.b16 %v2068, %v2064
        %v2141 = vpack.c.b16 %v2069, %v2065
        %v2142 = vpack.c.b16 %v2074, %v2070
        %v2143 = vpack.c.b16 %v2075, %v2071
        %v2144 = vpack.c.b16 %v2076, %v2072
        %v2145 = vpack.c.b16 %v2077, %v2073
        %v2146 = vpack.c.b16 %v2082, %v2078
        %v2147 = vpack.c.b16 %v2083, %v2079
        %v2148 = vpack.c.b16 %v2084, %v2080
        %v2149 = vpack.c.b16 %v2085, %v2081
        %2214 = vmatprep.subr.bf16.mxu0 %v2087
        %2215 = vmatpush1.bf16.msra.mxu0 %v2086
        %2216 = vmatprep.subr.bf16.mxu0 %v2091
        %2217 = vmatpush1.bf16.msra.mxu0 %v2090
        %2218 = vmatprep.subr.bf16.mxu0 %v2095
        %2219 = vmatpush1.bf16.msra.mxu0 %v2094
        %2220 = vmatprep.subr.bf16.mxu0 %v2099
        %2221 = vmatpush1.bf16.msra.mxu0 %v2098
        %2222 = vmatprep.subr.bf16.mxu0 %v2103
        %2223 = vmatpush1.bf16.msra.mxu0 %v2102
        %2224 = vmatprep.subr.bf16.mxu0 %v2107
        %2225 = vmatpush1.bf16.msra.mxu0 %v2106
        %2226 = vmatprep.subr.bf16.mxu0 %v2111
        %2227 = vmatpush1.bf16.msra.mxu0 %v2110
        %2228 = vmatprep.subr.bf16.mxu0 %v2115
        %2229 = vmatpush1.bf16.msra.mxu0 %v2114
        %2230 = vmatprep.subr.bf16.mxu0 %v2119
        %2231 = vmatpush1.bf16.msra.mxu0 %v2118
        %2232 = vmatprep.subr.bf16.mxu0 %v2123
        %2233 = vmatpush1.bf16.msra.mxu0 %v2122
        %2234 = vmatprep.subr.bf16.mxu0 %v2127
        %2235 = vmatpush1.bf16.msra.mxu0 %v2126
        %2236 = vmatprep.subr.bf16.mxu0 %v2131
        %2237 = vmatpush1.bf16.msra.mxu0 %v2130
        %2238 = vmatprep.subr.bf16.mxu0 %v2135
        %2239 = vmatpush1.bf16.msra.mxu0 %v2134
        %2240 = vmatprep.subr.bf16.mxu0 %v2139
        %2241 = vmatpush1.bf16.msra.mxu0 %v2138
        %2242 = vmatprep.subr.bf16.mxu0 %v2143
        %2243 = vmatpush1.bf16.msra.mxu0 %v2142
        %2244 = vmatprep.subr.bf16.mxu0 %v2147
        %2245 = vmatpush1.bf16.msra.mxu0 %v2146
        %2246 = vmatprep.mubr.bf16.mxu0 %v1807
        %2247 = vmatmul.mubr.bf16.gmra.mrb[0].mxu0 %v1806
        %v2248 = vpop.f32.mrb[0].mxu0
        %v2249 = vadd.f32 %v1877, %v2248
        %v2250 = vpop.f32.mrb[0].mxu0
        %v2251 = vadd.f32 %v1881, %v2250
        %v2252 = vpop.f32.mrb[0].mxu0
        %v2253 = vadd.f32 %v1877, %v2252
        %v2254 = vpop.f32.mrb[0].mxu0
        %v2255 = vadd.f32 %v1881, %v2254
        %2256 = vdwg.mxu0
        %2257 = vmatprep.subr.bf16.mxu0 %v2089
        %2258 = vmatpush1.bf16.msra.mxu0 %v2088
        %2259 = vmatprep.subr.bf16.mxu0 %v2093
        %2260 = vmatpush1.bf16.msra.mxu0 %v2092
        %2261 = vmatprep.subr.bf16.mxu0 %v2097
        %2262 = vmatpush1.bf16.msra.mxu0 %v2096
        %2263 = vmatprep.subr.bf16.mxu0 %v2101
        %2264 = vmatpush1.bf16.msra.mxu0 %v2100
        %2265 = vmatprep.subr.bf16.mxu0 %v2105
        %2266 = vmatpush1.bf16.msra.mxu0 %v2104
        %2267 = vmatprep.subr.bf16.mxu0 %v2109
        %2268 = vmatpush1.bf16.msra.mxu0 %v2108
        %2269 = vmatprep.subr.bf16.mxu0 %v2113
        %2270 = vmatpush1.bf16.msra.mxu0 %v2112
        %2271 = vmatprep.subr.bf16.mxu0 %v2117
        %2272 = vmatpush1.bf16.msra.mxu0 %v2116
        %2273 = vmatprep.subr.bf16.mxu0 %v2121
        %2274 = vmatpush1.bf16.msra.mxu0 %v2120
        %2275 = vmatprep.subr.bf16.mxu0 %v2125
        %2276 = vmatpush1.bf16.msra.mxu0 %v2124
        %2277 = vmatprep.subr.bf16.mxu0 %v2129
        %2278 = vmatpush1.bf16.msra.mxu0 %v2128
        %2279 = vmatprep.subr.bf16.mxu0 %v2133
        %2280 = vmatpush1.bf16.msra.mxu0 %v2132
        %2281 = vmatprep.subr.bf16.mxu0 %v2137
        %2282 = vmatpush1.bf16.msra.mxu0 %v2136
        %2283 = vmatprep.subr.bf16.mxu0 %v2141
        %2284 = vmatpush1.bf16.msra.mxu0 %v2140
        %2285 = vmatprep.subr.bf16.mxu0 %v2145
        %2286 = vmatpush1.bf16.msra.mxu0 %v2144
        %2287 = vmatprep.subr.bf16.mxu0 %v2149
        %2288 = vmatpush1.bf16.msra.mxu0 %v2148
        %2289 = vmatprep.mubr.bf16.mxu0 %v1807
        %2290 = vmatmul.mubr.bf16.gmra.mrb[0].mxu0 %v1806
        %v2291 = vpop.f32.mrb[0].mxu0
        %v2292 = vadd.f32 %v1885, %v2291
        %v2293 = vpop.f32.mrb[0].mxu0
        %v2294 = vadd.f32 %v1889, %v2293
        %v2295 = vpop.f32.mrb[0].mxu0
        %v2296 = vadd.f32 %v1885, %v2295
        %v2297 = vpop.f32.mrb[0].mxu0
        %v2298 = vadd.f32 %v1889, %v2297
        %2299 = vdwg.mxu0
        %v2300 = vmul.f32 %v2249, 7.5
        %v2301 = vmul.f32 %v2251, 7.5
        %v2302 = vmul.f32 %v2292, 7.5
        %v2303 = vmul.f32 %v2294, 7.5
        %v2304 = vmul.f32 %v2253, 7.5
        %v2305 = vmul.f32 %v2255, 7.5
        %v2306 = vmul.f32 %v2296, 7.5
        %v2307 = vmul.f32 %v2298, 7.5
        %v2308 = vmin.f32 %v2300, 20.0
        %v2309 = vmin.f32 %v2301, 20.0
        %v2310 = vmin.f32 %v2302, 20.0
        %v2311 = vmin.f32 %v2303, 20.0
        %v2312 = vmin.f32 %v2304, 20.0
        %v2313 = vmin.f32 %v2305, 20.0
        %v2314 = vmin.f32 %v2306, 20.0
        %v2315 = vmin.f32 %v2307, 20.0
        %vm2316 = vcmp.gt.f32.partialorder %v2300, 20.0
        %vm2317 = vcmp.gt.f32.partialorder %v2301, 20.0
        %vm2318 = vcmp.gt.f32.partialorder %v2302, 20.0
        %vm2319 = vcmp.gt.f32.partialorder %v2303, 20.0
        %vm2320 = vcmp.gt.f32.partialorder %v2304, 20.0
        %vm2321 = vcmp.gt.f32.partialorder %v2305, 20.0
        %vm2322 = vcmp.gt.f32.partialorder %v2306, 20.0
        %vm2323 = vcmp.gt.f32.partialorder %v2307, 20.0
        %v2324 = vmul.f32 %v2308, 1.442695
        %v2325 = vpow.pop %v2324
        %v2326 = vmul.f32 %v2309, 1.442695
        %v2327 = vpow.pop %v2326
        %v2328 = vmul.f32 %v2310, 1.442695
        %v2329 = vpow.pop %v2328
        %v2330 = vmul.f32 %v2311, 1.442695
        %v2331 = vpow.pop %v2330
        %v2332 = vmul.f32 %v2312, 1.442695
        %v2333 = vpow.pop %v2332
        %v2334 = vmul.f32 %v2313, 1.442695
        %v2335 = vpow.pop %v2334
        %v2336 = vmul.f32 %v2314, 1.442695
        %v2337 = vpow.pop %v2336
        %v2338 = vmul.f32 %v2315, 1.442695
        %v2339 = vpow.pop %v2338
        %v2340 = vadd.f32 %v2325, 1.0
        %v2341 = vlog2.pop %v2340
        %v2342 = vmul.f32 %v2341, 0.6931472
        %v2343 = vmul.f32 -0.5, %v2325
        %v2344 = vadd.f32 %v2343, 1.0
        %v2345 = vmul.f32 %v2344, %v2325
        %v2346 = vand.u32 2147483647, %v2325
        %vm2347 = vcmp.lt.f32.partialorder %v2346, 0.0004427343
        %v2348 = vsel %vm2347, %v2345, %v2342
        %v2349 = vadd.f32 %v2327, 1.0
        %v2350 = vlog2.pop %v2349
        %v2351 = vmul.f32 %v2350, 0.6931472
        %v2352 = vmul.f32 -0.5, %v2327
        %v2353 = vadd.f32 %v2352, 1.0
        %v2354 = vmul.f32 %v2353, %v2327
        %v2355 = vand.u32 2147483647, %v2327
        %vm2356 = vcmp.lt.f32.partialorder %v2355, 0.0004427343
        %v2357 = vsel %vm2356, %v2354, %v2351
        %v2358 = vadd.f32 %v2329, 1.0
        %v2359 = vlog2.pop %v2358
        %v2360 = vmul.f32 %v2359, 0.6931472
        %v2361 = vmul.f32 -0.5, %v2329
        %v2362 = vadd.f32 %v2361, 1.0
        %v2363 = vmul.f32 %v2362, %v2329
        %v2364 = vand.u32 2147483647, %v2329
        %vm2365 = vcmp.lt.f32.partialorder %v2364, 0.0004427343
        %v2366 = vsel %vm2365, %v2363, %v2360
        %v2367 = vadd.f32 %v2331, 1.0
        %v2368 = vlog2.pop %v2367
        %v2369 = vmul.f32 %v2368, 0.6931472
        %v2370 = vmul.f32 -0.5, %v2331
        %v2371 = vadd.f32 %v2370, 1.0
        %v2372 = vmul.f32 %v2371, %v2331
        %v2373 = vand.u32 2147483647, %v2331
        %vm2374 = vcmp.lt.f32.partialorder %v2373, 0.0004427343
        %v2375 = vsel %vm2374, %v2372, %v2369
        %v2376 = vadd.f32 %v2333, 1.0
        %v2377 = vlog2.pop %v2376
        %v2378 = vmul.f32 %v2377, 0.6931472
        %v2379 = vmul.f32 -0.5, %v2333
        %v2380 = vadd.f32 %v2379, 1.0
        %v2381 = vmul.f32 %v2380, %v2333
        %v2382 = vand.u32 2147483647, %v2333
        %vm2383 = vcmp.lt.f32.partialorder %v2382, 0.0004427343
        %v2384 = vsel %vm2383, %v2381, %v2378
        %v2385 = vadd.f32 %v2335, 1.0
        %v2386 = vlog2.pop %v2385
        %v2387 = vmul.f32 %v2386, 0.6931472
        %v2388 = vmul.f32 -0.5, %v2335
        %v2389 = vadd.f32 %v2388, 1.0
        %v2390 = vmul.f32 %v2389, %v2335
        %v2391 = vand.u32 2147483647, %v2335
        %vm2392 = vcmp.lt.f32.partialorder %v2391, 0.0004427343
        %v2393 = vsel %vm2392, %v2390, %v2387
        %v2394 = vadd.f32 %v2337, 1.0
        %v2395 = vlog2.pop %v2394
        %v2396 = vmul.f32 %v2395, 0.6931472
        %v2397 = vmul.f32 -0.5, %v2337
        %v2398 = vadd.f32 %v2397, 1.0
        %v2399 = vmul.f32 %v2398, %v2337
        %v2400 = vand.u32 2147483647, %v2337
        %vm2401 = vcmp.lt.f32.partialorder %v2400, 0.0004427343
        %v2402 = vsel %vm2401, %v2399, %v2396
        %v2403 = vadd.f32 %v2339, 1.0
        %v2404 = vlog2.pop %v2403
        %v2405 = vmul.f32 %v2404, 0.6931472
        %v2406 = vmul.f32 -0.5, %v2339
        %v2407 = vadd.f32 %v2406, 1.0
        %v2408 = vmul.f32 %v2407, %v2339
        %v2409 = vand.u32 2147483647, %v2339
        %vm2410 = vcmp.lt.f32.partialorder %v2409, 0.0004427343
        %v2411 = vsel %vm2410, %v2408, %v2405
        %v2412 = vrcp.pop 7.5
        %v2413 = vmul.f32 %v2348, %v2412
        %v2414 = vmul.f32 %v2357, %v2412
        %v2415 = vmul.f32 %v2366, %v2412
        %v2416 = vmul.f32 %v2375, %v2412
        %v2417 = vmul.f32 %v2384, %v2412
        %v2418 = vmul.f32 %v2393, %v2412
        %v2419 = vmul.f32 %v2402, %v2412
        %v2420 = vmul.f32 %v2411, %v2412
        %v2421 = vsel %vm2316, %v2249, %v2413
        %v2422 = vsel %vm2317, %v2251, %v2414
        %v2423 = vsel %vm2318, %v2292, %v2415
        %v2424 = vsel %vm2319, %v2294, %v2416
        %v2425 = vsel %vm2320, %v2253, %v2417
        %v2426 = vsel %vm2321, %v2255, %v2418
        %v2427 = vsel %vm2322, %v2296, %v2419
        %v2428 = vsel %vm2323, %v2298, %v2420
        %v2429 = vpack.c.bf16 %v2425, %v2421
        %v2430 = vpack.c.bf16 %v2426, %v2422
        %v2431 = vpack.c.bf16 %v2427, %v2423
        %v2432 = vpack.c.bf16 %v2428, %v2424
        %v2433 = vld [vmem:[#allocation11] sm:$0xff]
        %v2434 = vld [vmem:[#allocation11 + $0x8] sm:$0xff]
        %v2435 = vld [vmem:[#allocation11 + $0x10] sm:$0xff]
        %v2436 = vld [vmem:[#allocation11 + $0x18] sm:$0xff]
        %v2437 = vld [vmem:[#allocation11 + $0x20] sm:$0xff]
        %v2438 = vld [vmem:[#allocation11 + $0x28] sm:$0xff]
        %v2439 = vld [vmem:[#allocation11 + $0x30] sm:$0xff]
        %v2440 = vld [vmem:[#allocation11 + $0x38] sm:$0xff]
        %v2441 = vld [vmem:[#allocation11 + $0x40] sm:$0xff]
        %v2442 = vld [vmem:[#allocation11 + $0x48] sm:$0xff]
        %v2443 = vld [vmem:[#allocation11 + $0x50] sm:$0xff]
        %v2444 = vld [vmem:[#allocation11 + $0x58] sm:$0xff]
        %v2445 = vld [vmem:[#allocation11 + $0x60] sm:$0xff]
        %v2446 = vld [vmem:[#allocation11 + $0x68] sm:$0xff]
        %v2447 = vld [vmem:[#allocation11 + $0x70] sm:$0xff]
        %v2448 = vld [vmem:[#allocation11 + $0x78] sm:$0xff]
        %v2449 = vld [vmem:[#allocation11 + $0x80] sm:$0xff]
        %v2450 = vld [vmem:[#allocation11 + $0x88] sm:$0xff]
        %v2451 = vld [vmem:[#allocation11 + $0x90] sm:$0xff]
        %v2452 = vld [vmem:[#allocation11 + $0x98] sm:$0xff]
        %v2453 = vld [vmem:[#allocation11 + $0xa0] sm:$0xff]
        %v2454 = vld [vmem:[#allocation11 + $0xa8] sm:$0xff]
        %v2455 = vld [vmem:[#allocation11 + $0xb0] sm:$0xff]
        %v2456 = vld [vmem:[#allocation11 + $0xb8] sm:$0xff]
        %v2457 = vld [vmem:[#allocation11 + $0xc0] sm:$0xff]
        %v2458 = vld [vmem:[#allocation11 + $0xc8] sm:$0xff]
        %v2459 = vld [vmem:[#allocation11 + $0xd0] sm:$0xff]
        %v2460 = vld [vmem:[#allocation11 + $0xd8] sm:$0xff]
        %v2461 = vld [vmem:[#allocation11 + $0xe0] sm:$0xff]
        %v2462 = vld [vmem:[#allocation11 + $0xe8] sm:$0xff]
        %v2463 = vld [vmem:[#allocation11 + $0xf0] sm:$0xff]
        %v2464 = vld [vmem:[#allocation11 + $0xf8] sm:$0xff]
        %v2465 = vld [vmem:[#allocation11 + $0x100] sm:$0xff]
        %v2466 = vld [vmem:[#allocation11 + $0x108] sm:$0xff]
        %v2467 = vld [vmem:[#allocation11 + $0x110] sm:$0xff]
        %v2468 = vld [vmem:[#allocation11 + $0x118] sm:$0xff]
        %v2469 = vld [vmem:[#allocation11 + $0x120] sm:$0xff]
        %v2470 = vld [vmem:[#allocation11 + $0x128] sm:$0xff]
        %v2471 = vld [vmem:[#allocation11 + $0x130] sm:$0xff]
        %v2472 = vld [vmem:[#allocation11 + $0x138] sm:$0xff]
        %v2473 = vld [vmem:[#allocation11 + $0x140] sm:$0xff]
        %v2474 = vld [vmem:[#allocation11 + $0x148] sm:$0xff]
        %v2475 = vld [vmem:[#allocation11 + $0x150] sm:$0xff]
        %v2476 = vld [vmem:[#allocation11 + $0x158] sm:$0xff]
        %v2477 = vld [vmem:[#allocation11 + $0x160] sm:$0xff]
        %v2478 = vld [vmem:[#allocation11 + $0x168] sm:$0xff]
        %v2479 = vld [vmem:[#allocation11 + $0x170] sm:$0xff]
        %v2480 = vld [vmem:[#allocation11 + $0x178] sm:$0xff]
        %v2481 = vld [vmem:[#allocation11 + $0x180] sm:$0xff]
        %v2482 = vld [vmem:[#allocation11 + $0x188] sm:$0xff]
        %v2483 = vld [vmem:[#allocation11 + $0x190] sm:$0xff]
        %v2484 = vld [vmem:[#allocation11 + $0x198] sm:$0xff]
        %v2485 = vld [vmem:[#allocation11 + $0x1a0] sm:$0xff]
        %v2486 = vld [vmem:[#allocation11 + $0x1a8] sm:$0xff]
        %v2487 = vld [vmem:[#allocation11 + $0x1b0] sm:$0xff]
        %v2488 = vld [vmem:[#allocation11 + $0x1b8] sm:$0xff]
        %v2489 = vld [vmem:[#allocation11 + $0x1c0] sm:$0xff]
        %v2490 = vld [vmem:[#allocation11 + $0x1c8] sm:$0xff]
        %v2491 = vld [vmem:[#allocation11 + $0x1d0] sm:$0xff]
        %v2492 = vld [vmem:[#allocation11 + $0x1d8] sm:$0xff]
        %v2493 = vld [vmem:[#allocation11 + $0x1e0] sm:$0xff]
        %v2494 = vld [vmem:[#allocation11 + $0x1e8] sm:$0xff]
        %v2495 = vld [vmem:[#allocation11 + $0x1f0] sm:$0xff]
        %v2496 = vld [vmem:[#allocation11 + $0x1f8] sm:$0xff]
        %v2497 = vld [vmem:[%s12] sm:$0x3]
        %v2499 = vlaneseq
        %v2500 = vshrl.u32 %v2499, 7
        %v2501 = vsub.s32 0, %v2500
        %v2502 = vrot.slane %v2497, %v2501
        %v2503 = vlaneseq
        %v2504 = vshrl.u32 %v2503, 7
        %v2505 = vsub.s32 1, %v2504
        %v2506 = vrot.slane %v2497, %v2505
        %v2573 = vunpack.c.l.b16 %v2433
        %v2574 = vunpack.c.h.b16 %v2433
        %v2575 = vunpack.c.l.b16 %v2434
        %v2576 = vunpack.c.h.b16 %v2434
        %v2577 = vunpack.c.l.b16 %v2435
        %v2578 = vunpack.c.h.b16 %v2435
        %v2579 = vunpack.c.l.b16 %v2436
        %v2580 = vunpack.c.h.b16 %v2436
        %v2581 = vunpack.c.l.b16 %v2437
        %v2582 = vunpack.c.h.b16 %v2437
        %v2583 = vunpack.c.l.b16 %v2438
        %v2584 = vunpack.c.h.b16 %v2438
        %v2585 = vunpack.c.l.b16 %v2439
        %v2586 = vunpack.c.h.b16 %v2439
        %v2587 = vunpack.c.l.b16 %v2440
        %v2588 = vunpack.c.h.b16 %v2440
        %v2589 = vunpack.c.l.b16 %v2441
        %v2590 = vunpack.c.h.b16 %v2441
        %v2591 = vunpack.c.l.b16 %v2442
        %v2592 = vunpack.c.h.b16 %v2442
        %v2593 = vunpack.c.l.b16 %v2443
        %v2594 = vunpack.c.h.b16 %v2443
        %v2595 = vunpack.c.l.b16 %v2444
        %v2596 = vunpack.c.h.b16 %v2444
        %v2597 = vunpack.c.l.b16 %v2445
        %v2598 = vunpack.c.h.b16 %v2445
        %v2599 = vunpack.c.l.b16 %v2446
        %v2600 = vunpack.c.h.b16 %v2446
        %v2601 = vunpack.c.l.b16 %v2447
        %v2602 = vunpack.c.h.b16 %v2447
        %v2603 = vunpack.c.l.b16 %v2448
        %v2604 = vunpack.c.h.b16 %v2448
        %v2605 = vunpack.c.l.b16 %v2449
        %v2606 = vunpack.c.h.b16 %v2449
        %v2607 = vunpack.c.l.b16 %v2450
        %v2608 = vunpack.c.h.b16 %v2450
        %v2609 = vunpack.c.l.b16 %v2451
        %v2610 = vunpack.c.h.b16 %v2451
        %v2611 = vunpack.c.l.b16 %v2452
        %v2612 = vunpack.c.h.b16 %v2452
        %v2613 = vunpack.c.l.b16 %v2453
        %v2614 = vunpack.c.h.b16 %v2453
        %v2615 = vunpack.c.l.b16 %v2454
        %v2616 = vunpack.c.h.b16 %v2454
        %v2617 = vunpack.c.l.b16 %v2455
        %v2618 = vunpack.c.h.b16 %v2455
        %v2619 = vunpack.c.l.b16 %v2456
        %v2620 = vunpack.c.h.b16 %v2456
        %v2621 = vunpack.c.l.b16 %v2457
        %v2622 = vunpack.c.h.b16 %v2457
        %v2623 = vunpack.c.l.b16 %v2458
        %v2624 = vunpack.c.h.b16 %v2458
        %v2625 = vunpack.c.l.b16 %v2459
        %v2626 = vunpack.c.h.b16 %v2459
        %v2627 = vunpack.c.l.b16 %v2460
        %v2628 = vunpack.c.h.b16 %v2460
        %v2629 = vunpack.c.l.b16 %v2461
        %v2630 = vunpack.c.h.b16 %v2461
        %v2631 = vunpack.c.l.b16 %v2462
        %v2632 = vunpack.c.h.b16 %v2462
        %v2633 = vunpack.c.l.b16 %v2463
        %v2634 = vunpack.c.h.b16 %v2463
        %v2635 = vunpack.c.l.b16 %v2464
        %v2636 = vunpack.c.h.b16 %v2464
        %v2637 = vunpack.c.l.b16 %v2465
        %v2638 = vunpack.c.h.b16 %v2465
        %v2639 = vunpack.c.l.b16 %v2466
        %v2640 = vunpack.c.h.b16 %v2466
        %v2641 = vunpack.c.l.b16 %v2467
        %v2642 = vunpack.c.h.b16 %v2467
        %v2643 = vunpack.c.l.b16 %v2468
        %v2644 = vunpack.c.h.b16 %v2468
        %v2645 = vunpack.c.l.b16 %v2469
        %v2646 = vunpack.c.h.b16 %v2469
        %v2647 = vunpack.c.l.b16 %v2470
        %v2648 = vunpack.c.h.b16 %v2470
        %v2649 = vunpack.c.l.b16 %v2471
        %v2650 = vunpack.c.h.b16 %v2471
        %v2651 = vunpack.c.l.b16 %v2472
        %v2652 = vunpack.c.h.b16 %v2472
        %v2653 = vunpack.c.l.b16 %v2473
        %v2654 = vunpack.c.h.b16 %v2473
        %v2655 = vunpack.c.l.b16 %v2474
        %v2656 = vunpack.c.h.b16 %v2474
        %v2657 = vunpack.c.l.b16 %v2475
        %v2658 = vunpack.c.h.b16 %v2475
        %v2659 = vunpack.c.l.b16 %v2476
        %v2660 = vunpack.c.h.b16 %v2476
        %v2661 = vunpack.c.l.b16 %v2477
        %v2662 = vunpack.c.h.b16 %v2477
        %v2663 = vunpack.c.l.b16 %v2478
        %v2664 = vunpack.c.h.b16 %v2478
        %v2665 = vunpack.c.l.b16 %v2479
        %v2666 = vunpack.c.h.b16 %v2479
        %v2667 = vunpack.c.l.b16 %v2480
        %v2668 = vunpack.c.h.b16 %v2480
        %v2669 = vunpack.c.l.b16 %v2481
        %v2670 = vunpack.c.h.b16 %v2481
        %v2671 = vunpack.c.l.b16 %v2482
        %v2672 = vunpack.c.h.b16 %v2482
        %v2673 = vunpack.c.l.b16 %v2483
        %v2674 = vunpack.c.h.b16 %v2483
        %v2675 = vunpack.c.l.b16 %v2484
        %v2676 = vunpack.c.h.b16 %v2484
        %v2677 = vunpack.c.l.b16 %v2485
        %v2678 = vunpack.c.h.b16 %v2485
        %v2679 = vunpack.c.l.b16 %v2486
        %v2680 = vunpack.c.h.b16 %v2486
        %v2681 = vunpack.c.l.b16 %v2487
        %v2682 = vunpack.c.h.b16 %v2487
        %v2683 = vunpack.c.l.b16 %v2488
        %v2684 = vunpack.c.h.b16 %v2488
        %v2685 = vunpack.c.l.b16 %v2489
        %v2686 = vunpack.c.h.b16 %v2489
        %v2687 = vunpack.c.l.b16 %v2490
        %v2688 = vunpack.c.h.b16 %v2490
        %v2689 = vunpack.c.l.b16 %v2491
        %v2690 = vunpack.c.h.b16 %v2491
        %v2691 = vunpack.c.l.b16 %v2492
        %v2692 = vunpack.c.h.b16 %v2492
        %v2693 = vunpack.c.l.b16 %v2493
        %v2694 = vunpack.c.h.b16 %v2493
        %v2695 = vunpack.c.l.b16 %v2494
        %v2696 = vunpack.c.h.b16 %v2494
        %v2697 = vunpack.c.l.b16 %v2495
        %v2698 = vunpack.c.h.b16 %v2495
        %v2699 = vunpack.c.l.b16 %v2496
        %v2700 = vunpack.c.h.b16 %v2496
        %v2701 = vpack.c.b16 %v2575, %v2573
        %v2702 = vpack.c.b16 %v2576, %v2574
        %v2703 = vpack.c.b16 %v2579, %v2577
        %v2704 = vpack.c.b16 %v2580, %v2578
        %v2705 = vpack.c.b16 %v2583, %v2581
        %v2706 = vpack.c.b16 %v2584, %v2582
        %v2707 = vpack.c.b16 %v2587, %v2585
        %v2708 = vpack.c.b16 %v2588, %v2586
        %v2709 = vpack.c.b16 %v2591, %v2589
        %v2710 = vpack.c.b16 %v2592, %v2590
        %v2711 = vpack.c.b16 %v2595, %v2593
        %v2712 = vpack.c.b16 %v2596, %v2594
        %v2713 = vpack.c.b16 %v2599, %v2597
        %v2714 = vpack.c.b16 %v2600, %v2598
        %v2715 = vpack.c.b16 %v2603, %v2601
        %v2716 = vpack.c.b16 %v2604, %v2602
        %v2717 = vpack.c.b16 %v2607, %v2605
        %v2718 = vpack.c.b16 %v2608, %v2606
        %v2719 = vpack.c.b16 %v2611, %v2609
        %v2720 = vpack.c.b16 %v2612, %v2610
        %v2721 = vpack.c.b16 %v2615, %v2613
        %v2722 = vpack.c.b16 %v2616, %v2614
        %v2723 = vpack.c.b16 %v2619, %v2617
        %v2724 = vpack.c.b16 %v2620, %v2618
        %v2725 = vpack.c.b16 %v2623, %v2621
        %v2726 = vpack.c.b16 %v2624, %v2622
        %v2727 = vpack.c.b16 %v2627, %v2625
        %v2728 = vpack.c.b16 %v2628, %v2626
        %v2729 = vpack.c.b16 %v2631, %v2629
        %v2730 = vpack.c.b16 %v2632, %v2630
        %v2731 = vpack.c.b16 %v2635, %v2633
        %v2732 = vpack.c.b16 %v2636, %v2634
        %v2733 = vpack.c.b16 %v2639, %v2637
        %v2734 = vpack.c.b16 %v2640, %v2638
        %v2735 = vpack.c.b16 %v2643, %v2641
        %v2736 = vpack.c.b16 %v2644, %v2642
        %v2737 = vpack.c.b16 %v2647, %v2645
        %v2738 = vpack.c.b16 %v2648, %v2646
        %v2739 = vpack.c.b16 %v2651, %v2649
        %v2740 = vpack.c.b16 %v2652, %v2650
        %v2741 = vpack.c.b16 %v2655, %v2653
        %v2742 = vpack.c.b16 %v2656, %v2654
        %v2743 = vpack.c.b16 %v2659, %v2657
        %v2744 = vpack.c.b16 %v2660, %v2658
        %v2745 = vpack.c.b16 %v2663, %v2661
        %v2746 = vpack.c.b16 %v2664, %v2662
        %v2747 = vpack.c.b16 %v2667, %v2665
        %v2748 = vpack.c.b16 %v2668, %v2666
        %v2749 = vpack.c.b16 %v2671, %v2669
        %v2750 = vpack.c.b16 %v2672, %v2670
        %v2751 = vpack.c.b16 %v2675, %v2673
        %v2752 = vpack.c.b16 %v2676, %v2674
        %v2753 = vpack.c.b16 %v2679, %v2677
        %v2754 = vpack.c.b16 %v2680, %v2678
        %v2755 = vpack.c.b16 %v2683, %v2681
        %v2756 = vpack.c.b16 %v2684, %v2682
        %v2757 = vpack.c.b16 %v2687, %v2685
        %v2758 = vpack.c.b16 %v2688, %v2686
        %v2759 = vpack.c.b16 %v2691, %v2689
        %v2760 = vpack.c.b16 %v2692, %v2690
        %v2761 = vpack.c.b16 %v2695, %v2693
        %v2762 = vpack.c.b16 %v2696, %v2694
        %v2763 = vpack.c.b16 %v2699, %v2697
        %v2764 = vpack.c.b16 %v2700, %v2698
        %2829 = vmatprep.subr.bf16.mxu0 %v2702
        %2830 = vmatpush1.bf16.msra.mxu0 %v2701
        %2831 = vmatprep.subr.bf16.mxu0 %v2704
        %2832 = vmatpush1.bf16.msra.mxu0 %v2703
        %2833 = vmatprep.subr.bf16.mxu0 %v2706
        %2834 = vmatpush1.bf16.msra.mxu0 %v2705
        %2835 = vmatprep.subr.bf16.mxu0 %v2708
        %2836 = vmatpush1.bf16.msra.mxu0 %v2707
        %2837 = vmatprep.subr.bf16.mxu0 %v2710
        %2838 = vmatpush1.bf16.msra.mxu0 %v2709
        %2839 = vmatprep.subr.bf16.mxu0 %v2712
        %2840 = vmatpush1.bf16.msra.mxu0 %v2711
        %2841 = vmatprep.subr.bf16.mxu0 %v2714
        %2842 = vmatpush1.bf16.msra.mxu0 %v2713
        %2843 = vmatprep.subr.bf16.mxu0 %v2716
        %2844 = vmatpush1.bf16.msra.mxu0 %v2715
        %2845 = vmatprep.subr.bf16.mxu0 %v2718
        %2846 = vmatpush1.bf16.msra.mxu0 %v2717
        %2847 = vmatprep.subr.bf16.mxu0 %v2720
        %2848 = vmatpush1.bf16.msra.mxu0 %v2719
        %2849 = vmatprep.subr.bf16.mxu0 %v2722
        %2850 = vmatpush1.bf16.msra.mxu0 %v2721
        %2851 = vmatprep.subr.bf16.mxu0 %v2724
        %2852 = vmatpush1.bf16.msra.mxu0 %v2723
        %2853 = vmatprep.subr.bf16.mxu0 %v2726
        %2854 = vmatpush1.bf16.msra.mxu0 %v2725
        %2855 = vmatprep.subr.bf16.mxu0 %v2728
        %2856 = vmatpush1.bf16.msra.mxu0 %v2727
        %2857 = vmatprep.subr.bf16.mxu0 %v2730
        %2858 = vmatpush1.bf16.msra.mxu0 %v2729
        %2859 = vmatprep.subr.bf16.mxu0 %v2732
        %2860 = vmatpush1.bf16.msra.mxu0 %v2731
        %2861 = vmatprep.mubr.bf16.mxu0 %v2430
        %2862 = vmatmul.mubr.bf16.gmra.mrb[0].mxu0 %v2429
        %v2863 = vpop.f32.mrb[0].mxu0
        %v2864 = vadd.f32 %v2502, %v2863
        %v2865 = vpop.f32.mrb[0].mxu0
        %v2866 = vadd.f32 %v2506, %v2865
        %v2867 = vpop.f32.mrb[0].mxu0
        %v2868 = vadd.f32 %v2502, %v2867
        %v2869 = vpop.f32.mrb[0].mxu0
        %v2870 = vadd.f32 %v2506, %v2869
        %2871 = vdwg.mxu0
        %2872 = vmatprep.subr.bf16.mxu0 %v2734
        %2873 = vmatpush1.bf16.msra.mxu0 %v2733
        %2874 = vmatprep.subr.bf16.mxu0 %v2736
        %2875 = vmatpush1.bf16.msra.mxu0 %v2735
        %2876 = vmatprep.subr.bf16.mxu0 %v2738
        %2877 = vmatpush1.bf16.msra.mxu0 %v2737
        %2878 = vmatprep.subr.bf16.mxu0 %v2740
        %2879 = vmatpush1.bf16.msra.mxu0 %v2739
        %2880 = vmatprep.subr.bf16.mxu0 %v2742
        %2881 = vmatpush1.bf16.msra.mxu0 %v2741
        %2882 = vmatprep.subr.bf16.mxu0 %v2744
        %2883 = vmatpush1.bf16.msra.mxu0 %v2743
        %2884 = vmatprep.subr.bf16.mxu0 %v2746
        %2885 = vmatpush1.bf16.msra.mxu0 %v2745
        %2886 = vmatprep.subr.bf16.mxu0 %v2748
        %2887 = vmatpush1.bf16.msra.mxu0 %v2747
        %2888 = vmatprep.subr.bf16.mxu0 %v2750
        %2889 = vmatpush1.bf16.msra.mxu0 %v2749
        %2890 = vmatprep.subr.bf16.mxu0 %v2752
        %2891 = vmatpush1.bf16.msra.mxu0 %v2751
        %2892 = vmatprep.subr.bf16.mxu0 %v2754
        %2893 = vmatpush1.bf16.msra.mxu0 %v2753
        %2894 = vmatprep.subr.bf16.mxu0 %v2756
        %2895 = vmatpush1.bf16.msra.mxu0 %v2755
        %2896 = vmatprep.subr.bf16.mxu0 %v2758
        %2897 = vmatpush1.bf16.msra.mxu0 %v2757
        %2898 = vmatprep.subr.bf16.mxu0 %v2760
        %2899 = vmatpush1.bf16.msra.mxu0 %v2759
        %2900 = vmatprep.subr.bf16.mxu0 %v2762
        %2901 = vmatpush1.bf16.msra.mxu0 %v2761
        %2902 = vmatprep.subr.bf16.mxu0 %v2764
        %2903 = vmatpush1.bf16.msra.mxu0 %v2763
        %2904 = vmatprep.mubr.bf16.mxu0 %v2432
        %2905 = vmatmul.mubr.bf16.gmra.mrb[0].mxu0 %v2431
        %v2906 = vpop.f32.mrb[0].mxu0
        %v2907 = vadd.f32 %v2864, %v2906
        %v2908 = vpop.f32.mrb[0].mxu0
        %v2909 = vadd.f32 %v2866, %v2908
        %v2910 = vpop.f32.mrb[0].mxu0
        %v2911 = vadd.f32 %v2868, %v2910
        %v2912 = vpop.f32.mrb[0].mxu0
        %v2913 = vadd.f32 %v2870, %v2912
        %2914 = vdwg.mxu0
        %v2915 = vadd.f32 %v1802, %v2907
        %v2916 = vadd.f32 %v1803, %v2909
        %v2917 = vadd.f32 %v1804, %v2911
        %v2918 = vadd.f32 %v1805, %v2913
        %v2919 = vld [vmem:[%s7] sm:$0x3]
        %v2920 = vld [vmem:[%s8] sm:$0x3]
        %v2921 = vadd.f32 %v2915, %v2916
        %2922 = vadd.xlane.f32.xlu0 %v2921
        %v2923 = vpop.xlane.xlu0 %2922
        %v2924 = vadd.f32 %v2917, %v2918
        %2925 = vadd.xlane.f32.xlu0 %v2924
        %v2926 = vpop.xlane.xlu0 %2925
        %v2927 = vmul.f32 %v2923, %v1749
        %v2928 = vmul.f32 %v2926, %v1749
        %v2929 = vsub.f32 %v2915, %v2927
        %v2930 = vsub.f32 %v2916, %v2927
        %v2931 = vsub.f32 %v2917, %v2928
        %v2932 = vsub.f32 %v2918, %v2928
        %v2933 = vmul.f32 %v2929, %v2929
        %v2934 = vmul.f32 %v2930, %v2930
        %v2935 = vmul.f32 %v2931, %v2931
        %v2936 = vmul.f32 %v2932, %v2932
        %v2937 = vadd.f32 %v2933, %v2934
        %2938 = vadd.xlane.f32.xlu0 %v2937
        %v2939 = vpop.xlane.xlu0 %2938
        %v2940 = vadd.f32 %v2935, %v2936
        %2941 = vadd.xlane.f32.xlu0 %v2940
        %v2942 = vpop.xlane.xlu0 %2941
        %v2943 = vmul.f32 %v2939, %v1749
        %v2944 = vmul.f32 %v2942, %v1749
        %v2945 = vadd.f32 %v2943, 1e-05
        %v2946 = vadd.f32 %v2944, 1e-05
        %v2947 = vrsqrt.pop %v2945
        %v2948 = vrsqrt.pop %v2946
        %v2949 = vmul.f32 %v2929, %v2947
        %v2950 = vmul.f32 %v2930, %v2947
        %v2951 = vmul.f32 %v2931, %v2948
        %v2952 = vmul.f32 %v2932, %v2948
        %v2954 = vlaneseq
        %v2955 = vshrl.u32 %v2954, 7
        %v2956 = vsub.s32 0, %v2955
        %v2957 = vrot.slane %v2919, %v2956
        %v2958 = vlaneseq
        %v2959 = vshrl.u32 %v2958, 7
        %v2960 = vsub.s32 1, %v2959
        %v2961 = vrot.slane %v2919, %v2960
        %v2964 = vmul.f32 %v2949, %v2957
        %v2965 = vmul.f32 %v2950, %v2961
        %v2966 = vmul.f32 %v2951, %v2957
        %v2967 = vmul.f32 %v2952, %v2961
        %v2969 = vlaneseq
        %v2970 = vshrl.u32 %v2969, 7
        %v2971 = vsub.s32 0, %v2970
        %v2972 = vrot.slane %v2920, %v2971
        %v2973 = vlaneseq
        %v2974 = vshrl.u32 %v2973, 7
        %v2975 = vsub.s32 1, %v2974
        %v2976 = vrot.slane %v2920, %v2975
        %v2979 = vadd.f32 %v2964, %v2972
        %v2980 = vadd.f32 %v2965, %v2976
        %v2981 = vadd.f32 %v2966, %v2972
        %v2982 = vadd.f32 %v2967, %v2976
        %2983 = vst [vmem:[%s516] sm:$0xff] %v2979
        %2984 = vst [vmem:[%s516 + $0x8] sm:$0xff] %v2980
        %2985 = vst [vmem:[%s516 + $0x10] sm:$0xff] %v2981
        %2986 = vst [vmem:[%s516 + $0x18] sm:$0xff] %v2982
        %s2987 = sand.u32 %s318, 1
        %s2988 = scalar_lea.sflag [#allocation5], %s2987
        %s2989 = sand.u32 %s318, 1
        %s2990 = smul.addr %s2989, 32
        %s2991 = scalar_lea.vmem [#allocation12], %s2990
        // Predicated region
        $region93: #{tpu_custom_call.1} parent=71 // pred_check
          %p2992 = pneg %p328
        $region94: #{tpu_custom_call.1} parent=71 // pred_check_branch
          %2994 = sbr.rel (%p2992) target = $region96
        $region95: #{tpu_custom_call.1} parent=71 // pred_region
          %s2996 = ssub.s32 512, 512
          %2997 = vsyncadd %s2988, %s2996
          %s2998 = smul.addr %s32, 4
          %s2999 = smul.addr %s2998, 128
          %s3000 = scalar_lea.hbm %s13, %s2999
          %s3001 = sshll.u32 %s2991, 4
          %s3002 = int_to_ptr.vmem [resolvable:$true] %s3001
          %3007 = dma.vmem_to_hbm [thread:$0]  %s3002, 512, %s3000, %s2988, 256, 256, 16
        $region96: #{tpu_custom_call.1} parent=71 // pred_fallthru
          _
      $region72: #{tpu_custom_call.1} parent=5 // pred_fallthru
        _
      %p3008 = scmp.le.s32.totalorder 2, %s27
      // Predicated region
      $region97: #{tpu_custom_call.1} parent=5 // pred_check
        %p3009 = pneg %p3008
      $region98: #{tpu_custom_call.1} parent=5 // pred_check_branch
        %3011 = sbr.rel (%p3009) target = $region100
      $region99: #{tpu_custom_call.1} parent=5 // pred_region
        %s3012 = ssub.s32 %s27, 2
        // Predicated region
        $region101: #{tpu_custom_call.1} parent=99 // pred_check
          %p3013 = pneg %p334
        $region102: #{tpu_custom_call.1} parent=99 // pred_check_branch
          %3015 = sbr.rel (%p3013) target = $region104
        $region103: #{tpu_custom_call.1} parent=99 // pred_region
          %s3016 = sand.u32 %s319, 1
          %s3017 = scalar_lea.sflag [#allocation5], %s3016
          %s3018 = sand.u32 %s319, 1
          %s3019 = smul.addr %s3018, 32
          %s3020 = scalar_lea.vmem [#allocation12], %s3019
          %3021 = dma.done %s3017, 512
        $region104: #{tpu_custom_call.1} parent=99 // pred_fallthru
          _
      $region100: #{tpu_custom_call.1} parent=5 // pred_fallthru
        _
    $region6: #{tpu_custom_call.1} parent=1 // loop_footer
      %s31 = sadd.s32 1, %s27
    $region7: #{tpu_custom_call.1} parent=1 // loop_footer_branch
      %26 = sbr.rel target = $region3
    $region8: #{tpu_custom_call.1} parent=1 // loop_exit
      _
    %3022 = vsyncpa [#allocation4], 1
    %s3023 = scalar_lea.sflag [#allocation4], 1
    %3024 = vsyncpa %s3023, 1
    %3025 = vsyncpa [#allocation7], 1
    %3026 = vsyncpa [#allocation10], 1
    %3027 = vsyncpa [#allocation5], 1
    %s3028 = scalar_lea.sflag [#allocation5], 1
    %3029 = vsyncpa %s3028, 1

</llo_original>
